<compile_context>
chip_gen: v5e
topology: v5e:2x2
jax: 0.10.0
libtpu: 0.0.40
codegen_flags: <defaults>
</compile_context>

<pallas_src>
import functools

import numpy as np

import jax
import jax.numpy as jnp
from jax.experimental import pallas as pl
from jax.experimental.pallas import tpu as pltpu


# ------------------------------- Pallas kernel ------------------------------ #

def _encoder_kernel(xq_ref, w1_ref, b1_ref, w2_ref, b2_ref, w3_ref, b3_ref,
                    r3_ref, r1_ref, o_ref, bandA_ref, bandB_ref, bandC_ref,
                    *, n_img, rpi, n_res):
    """Full Encoder1 forward for the whole (batch-folded) block.

    Activations are batch-stacked along rows: image b occupies rows
    [b*rpi, (b+1)*rpi).  Each conv is one matmul: LHS = [row-1 | row | row+1]
    im2col (built in a VMEM scratch; the per-image zero-pad rows are the
    scratch entries the writer never touches), RHS = tap-concatenated banded
    weights.
    """
    f32, bf16 = jnp.float32, jnp.bfloat16

    # Zero the im2col scratches once; pad spots are never written afterwards.
    bandA_ref[...] = jnp.zeros_like(bandA_ref)
    bandB_ref[...] = jnp.zeros_like(bandB_ref)
    bandC_ref[...] = jnp.zeros_like(bandC_ref)

    def band_lhs(v, scr):
        """3-tap height-banded im2col LHS (pad=1) for batch-stacked rows."""
        _, k = v.shape
        for b in range(n_img):
            r0 = b * rpi
            scr[r0 + 1:r0 + rpi, 0:k] = v[r0:r0 + rpi - 1, :]          # row i-1
            scr[r0:r0 + rpi, k:2 * k] = v[r0:r0 + rpi, :]              # row i
            scr[r0:r0 + rpi - 1, 2 * k:3 * k] = v[r0 + 1:r0 + rpi, :]  # row i+1
        return scr[...]

    # conv1: 4x4 / s2 / p1 + bias + ReLU   (quad-row in -> pair-row out)
    h = jnp.dot(band_lhs(xq_ref[...], bandA_ref).astype(bf16), w1_ref[...],
                preferred_element_type=f32) + b1_ref[...]
    h = jnp.maximum(h, 0.0)

    # conv2: 4x4 / s2 / p1 + bias + ReLU   (pair-row in -> single-row out)
    h = jnp.dot(band_lhs(h, bandB_ref).astype(bf16), w2_ref[...],
                preferred_element_type=f32) + b2_ref[...]
    h = jnp.maximum(h, 0.0)

    # conv3: 3x3 / s1 / p1 + bias (no activation before the residual stack)
    acc = jnp.dot(band_lhs(h, bandC_ref).astype(bf16), w3_ref[...],
                  preferred_element_type=f32) + b3_ref[...]

    # Residual stack: x += Conv1x1(ReLU(Conv3x3(ReLU(x)))); final ReLU.
    for layer in range(n_res):
        r = jnp.maximum(acc, 0.0)
        t = jnp.dot(band_lhs(r, bandC_ref).astype(bf16), r3_ref[layer],
                    preferred_element_type=f32)
        t = jnp.maximum(t, 0.0)
        # keep the small (K=32) 1x1 matmul in f32 for accuracy (review note)
        acc = acc + jnp.dot(t, r1_ref[layer], preferred_element_type=f32)

    o_ref[...] = jnp.maximum(acc, 0.0)


# ----------------------------- pallas_call wrapper --------------------------- #

def encoder1_pallas(xq, w1, b1, w2, b2, w3, b3, r3, r1, *, n_img, rpi, n_res):
    m, k0 = xq.shape
    n1 = w1.shape[-1]
    n2 = w3.shape[-1]
    assert m == n_img * rpi

    def full_spec(shape):
        return pl.BlockSpec(shape, lambda *_: (0,) * len(shape))

    kern = functools.partial(_encoder_kernel, n_img=n_img, rpi=rpi, n_res=n_res)
    return pl.pallas_call(
        kern,
        out_shape=jax.ShapeDtypeStruct((m, n2), jnp.float32),
        grid=(1,),
        in_specs=[full_spec(a.shape)
                  for a in (xq, w1, b1, w2, b2, w3, b3, r3, r1)],
        out_specs=full_spec((m, n2)),
        scratch_shapes=[
            pltpu.VMEM((m, 3 * k0), jnp.float32),   # conv1 im2col
            pltpu.VMEM((m, 3 * n1), jnp.float32),   # conv2 im2col
            pltpu.VMEM((m, 3 * n2), jnp.float32),   # conv3 / residual im2col
        ],
        compiler_params=pltpu.CompilerParams(
            dimension_semantics=("arbitrary",),
            vmem_limit_bytes=32 * 1024 * 1024,      # safe on v5e/v6e/v7x
        ),
    )(xq, w1, b1, w2, b2, w3, b3, r3, r1)


# -------------------- weight packing (host-side, done once) ------------------ #
# Activation layouts (lane index formulas):
#   quad-row input :  lane = (p*W   + wcol)*Cin + ci ,  p in [0,4)
#   pair-row h1    :  lane = (r*Wo1 + wcol)*C1  + c  ,  r in [0,2)
#   single-row h2  :  lane =          wcol *C2  + c

def _pack_conv1(w, W, Cin, C1):
    """4x4 / s2 / p1, quad-row input -> pair-row output; taps concat along K."""
    Wo1 = W // 2
    K, N = 4 * W * Cin, 2 * Wo1 * C1
    B = np.zeros((3, K, N), np.float32)
    for r in range(2):                       # output row within the pair-row
        for di in range(4):
            g = 2 * r + di - 1               # input row offset relative to 4s
            q, p = g // 4, g % 4             # quad-row offset, row within quad
            t = q + 1                        # tap index (0: s-1, 1: s, 2: s+1)
            for j2 in range(Wo1):
                for dj in range(4):
                    wc = 2 * j2 + dj - 1
                    if 0 <= wc < W:
                        ks = (p * W + wc) * Cin
                        ns = (r * Wo1 + j2) * C1
                        B[t, ks:ks + Cin, ns:ns + C1] = w[:, :, di, dj].T
    return B.reshape(3 * K, N)


def _pack_conv2(w, Wo1, C1, C2):
    """4x4 / s2 / p1, pair-row input -> single-row output; taps concat along K."""
    Wo2 = Wo1 // 2
    K, N = 2 * Wo1 * C1, Wo2 * C2
    B = np.zeros((3, K, N), np.float32)
    for di in range(4):
        g = di - 1                           # input row offset relative to 2i
        q, r = g // 2, g % 2
        t = q + 1
        for j2 in range(Wo2):
            for dj in range(4):
                wc = 2 * j2 + dj - 1
                if 0 <= wc < Wo1:
                    ks = (r * Wo1 + wc) * C1
                    ns = j2 * C2
                    B[t, ks:ks + C1, ns:ns + C2] = w[:, :, di, dj].T
    return B.reshape(3 * K, N)


def _pack_3x3(w, ws, Ci, Co):
    """3x3 / s1 / p1 on the single-row (W*C) layout; taps concat along K."""
    K, N = ws * Ci, ws * Co
    B = np.zeros((3, K, N), np.float32)
    for di in range(3):                      # tap 0/1/2 <-> input row i-1/i/i+1
        for j2 in range(ws):
            for dj in range(3):
                j = j2 + dj - 1
                if 0 <= j < ws:
                    B[di, j * Ci:(j + 1) * Ci, j2 * Co:(j2 + 1) * Co] = \
                        w[:, :, di, dj].T
    return B.reshape(3 * K, N)


def _pack_1x1(w, ws, Ci, Co):
    """1x1 conv -> block-diagonal (W*Ci, W*Co)."""
    B = np.zeros((ws * Ci, ws * Co), np.float32)
    for j in range(ws):
        B[j * Ci:(j + 1) * Ci, j * Co:(j + 1) * Co] = w[:, :, 0, 0].T
    return B


def _fold_bias(b, reps):
    return np.tile(np.asarray(b, np.float32), reps).reshape(1, -1)


def prepare_params(params, height, width):
    """Pack PyTorch-layout (OIHW) conv weights into matmul slabs (done once)."""
    assert height % 4 == 0 and width % 4 == 0
    w1 = np.asarray(params["w1"], np.float32)
    w2 = np.asarray(params["w2"], np.float32)
    w3 = np.asarray(params["w3"], np.float32)
    C1, Cin = w1.shape[0], w1.shape[1]
    C2 = w2.shape[0]
    Wo1, Wo2 = width // 2, width // 4

    prep = {
        "W1": jnp.asarray(_pack_conv1(w1, width, Cin, C1), jnp.bfloat16),
        "b1": jnp.asarray(_fold_bias(params["b1"], 2 * Wo1)),
        "W2": jnp.asarray(_pack_conv2(w2, Wo1, C1, C2), jnp.bfloat16),
        "b2": jnp.asarray(_fold_bias(params["b2"], Wo2)),
        "W3": jnp.asarray(_pack_3x3(w3, Wo2, C2, C2), jnp.bfloat16),
        "b3": jnp.asarray(_fold_bias(params["b3"], Wo2)),
    }
    if params["res"]:
        prep["R3"] = jnp.asarray(
            np.stack([_pack_3x3(np.asarray(rw3, np.float32), Wo2, C2,
                                np.asarray(rw3).shape[0])
                      for rw3, _ in params["res"]]), jnp.bfloat16)
        prep["R1"] = jnp.asarray(
            np.stack([_pack_1x1(np.asarray(rw1, np.float32), Wo2,
                                np.asarray(rw1).shape[1], C2)
                      for _, rw1 in params["res"]]), jnp.float32)
    else:  # dummies (never read) so the pallas_call signature stays fixed
        prep["R3"] = jnp.zeros((1, 3 * Wo2 * C2, Wo2), jnp.bfloat16)
        prep["R1"] = jnp.zeros((1, Wo2, Wo2 * C2), jnp.float32)
    return prep


# --------------------------------- Encoder1 ---------------------------------- #

def encoder1_forward(prep, x_nchw, *, n_res):
    n, c, h, w = x_nchw.shape
    assert h % 4 == 0 and w % 4 == 0
    # NCHW -> NHWC -> quad-row folded (batch folded into rows): (N*H/4, 4*W*C)
    x = jnp.transpose(x_nchw, (0, 2, 3, 1))
    xq = x.reshape(n * (h // 4), 4 * w * c)

    out = encoder1_pallas(xq, prep["W1"], prep["b1"], prep["W2"], prep["b2"],
                          prep["W3"], prep["b3"], prep["R3"], prep["R1"],
                          n_img=n, rpi=h // 4, n_res=n_res)

    c2 = prep["b3"].shape[1] // (w // 4)
    out = out.reshape(n, h // 4, w // 4, c2)
    # TODO(synk): keep the lane-dense folded NHWC layout if the downstream VQ
    # bottleneck can consume it; the transpose is only to match NCHW output.
    return jnp.transpose(out, (0, 3, 1, 2))


# ----------------------------- deterministic init ---------------------------- #

def init_params(key, in_channels, num_hiddens, num_residual_layers,
                num_residual_hiddens):
    def conv_init(k, cout, cin, ksz, bias=True):
        k1, k2 = jax.random.split(k)
        bound = 1.0 / (cin * ksz * ksz) ** 0.5
        w = jax.random.uniform(k1, (cout, cin, ksz, ksz), jnp.float32,
                               -bound, bound)
        b = (jax.random.uniform(k2, (cout,), jnp.float32, -bound, bound)
             if bias else None)
        return w, b

    keys = jax.random.split(key, 3 + 2 * num_residual_layers)
    w1, b1 = conv_init(keys[0], num_hiddens // 2, in_channels, 4)
    w2, b2 = conv_init(keys[1], num_hiddens, num_hiddens // 2, 4)
    w3, b3 = conv_init(keys[2], num_hiddens, num_hiddens, 3)
    res = []
    for i in range(num_residual_layers):
        rw3, _ = conv_init(keys[3 + 2 * i], num_residual_hiddens, num_hiddens,
                           3, bias=False)
        rw1, _ = conv_init(keys[4 + 2 * i], num_hiddens, num_residual_hiddens,
                           1, bias=False)
        res.append((rw3, rw1))
    return {"w1": w1, "b1": b1, "w2": w2, "b2": b2, "w3": w3, "b3": b3,
            "res": res}


# -------------------------------- JAX reference ------------------------------ #

def _conv_ref(x, w, b, stride, pad):
    out = jax.lax.conv_general_dilated(
        x, w, (stride, stride), [(pad, pad), (pad, pad)],
        dimension_numbers=("NCHW", "OIHW", "NCHW"),
        precision=jax.lax.Precision.HIGHEST)
    if b is not None:
        out = out + b[None, :, None, None]
    return out


def encoder1_ref(params, x):
    h = jax.nn.relu(_conv_ref(x, params["w1"], params["b1"], 2, 1))
    h = jax.nn.relu(_conv_ref(h, params["w2"], params["b2"], 2, 1))
    h = _conv_ref(h, params["w3"], params["b3"], 1, 1)
    for rw3, rw1 in params["res"]:
        t = jax.nn.relu(h)
        t = jax.nn.relu(_conv_ref(t, rw3, None, 1, 1))
        t = _conv_ref(t, rw1, None, 1, 0)
        h = h + t
    return jax.nn.relu(h)


# ------------------------------------ main ----------------------------------- #

if __name__ == "__main__":
    in_channels = 4
    num_hiddens = 32
    num_residual_layers = 2
    num_residual_hiddens = 8
    batch, spatial = 2, 16

    root = jax.random.PRNGKey(0)
    k_param, k_x = jax.random.split(root)
    params = init_params(k_param, in_channels, num_hiddens,
                         num_residual_layers, num_residual_hiddens)
    x = jax.random.normal(k_x, (batch, in_channels, spatial, spatial),
                          jnp.float32)

    prep = prepare_params(params, spatial, spatial)          # packed once
    fwd = jax.jit(functools.partial(encoder1_forward,
                                    n_res=num_residual_layers))
    out = jax.block_until_ready(fwd(prep, x))

    ref = jax.block_until_ready(encoder1_ref(params, x))
    assert out.shape == (batch, num_hiddens, spatial // 4, spatial // 4), out.shape
    # bf16 MXU operands with f32 accumulation -> ~1e-3 expected error.
    max_err = float(jnp.max(jnp.abs(out - ref)))
    assert jnp.allclose(out, ref, atol=2e-2, rtol=2e-2), f"max abs err {max_err}"

    print("KERNEL_OK")
</pallas_src>

<mosaic_0001>
module attributes {stable_mosaic.version = 11 : i64} {
  func.func @_encoder_kernel(%arg0: i32, %arg1: memref<8x256xf32, #tpu.memory_space<vmem>>, %arg2: memref<768x256xbf16, #tpu.memory_space<vmem>>, %arg3: memref<1x256xf32, #tpu.memory_space<vmem>>, %arg4: memref<768x128xbf16, #tpu.memory_space<vmem>>, %arg5: memref<1x128xf32, #tpu.memory_space<vmem>>, %arg6: memref<384x128xbf16, #tpu.memory_space<vmem>>, %arg7: memref<1x128xf32, #tpu.memory_space<vmem>>, %arg8: memref<2x384x32xbf16, #tpu.memory_space<vmem>>, %arg9: memref<2x32x128xf32, #tpu.memory_space<vmem>>, %arg10: memref<8x128xf32, #tpu.memory_space<vmem>>, %arg11: memref<8x768xf32, #tpu.memory_space<vmem>>, %arg12: memref<8x768xf32, #tpu.memory_space<vmem>>, %arg13: memref<8x384xf32, #tpu.memory_space<vmem>>) attributes {dimension_semantics = [#tpu.dimension_semantics<arbitrary>], iteration_bounds = array<i64: 1>, scalar_prefetch = 0 : i64, scratch_operands = 3 : i64, tpu.core_type = #tpu.core_type<tc>, window_params = [{pipeline_mode = #tpu.pipeline_mode<synchronous>, transform_indices = @transform_0, window_bounds = array<i64: 8, 256>}, {pipeline_mode = #tpu.pipeline_mode<synchronous>, transform_indices = @transform_1, window_bounds = array<i64: 768, 256>}, {pipeline_mode = #tpu.pipeline_mode<synchronous>, transform_indices = @transform_2, window_bounds = array<i64: 1, 256>}, {pipeline_mode = #tpu.pipeline_mode<synchronous>, transform_indices = @transform_3, window_bounds = array<i64: 768, 128>}, {pipeline_mode = #tpu.pipeline_mode<synchronous>, transform_indices = @transform_4, window_bounds = array<i64: 1, 128>}, {pipeline_mode = #tpu.pipeline_mode<synchronous>, transform_indices = @transform_5, window_bounds = array<i64: 384, 128>}, {pipeline_mode = #tpu.pipeline_mode<synchronous>, transform_indices = @transform_6, window_bounds = array<i64: 1, 128>}, {pipeline_mode = #tpu.pipeline_mode<synchronous>, transform_indices = @transform_7, window_bounds = array<i64: 2, 384, 32>}, {pipeline_mode = #tpu.pipeline_mode<synchronous>, transform_indices = @transform_8, window_bounds = array<i64: 2, 32, 128>}, {pipeline_mode = #tpu.pipeline_mode<synchronous>, transform_indices = @transform_9, window_bounds = array<i64: 8, 128>}]} {
    %cst = arith.constant 0.000000e+00 : f32
    %0 = vector.broadcast %cst : f32 to vector<8x768xf32>
    %c0 = arith.constant 0 : index
    %c0_0 = arith.constant 0 : index
    %1 = vector.load %arg11[%c0, %c0_0] : memref<8x768xf32, #tpu.memory_space<vmem>>, vector<8x768xf32>
    tpu.vector_store %arg11[%c0, %c0_0], %0 {strides = array<i32>} : memref<8x768xf32, #tpu.memory_space<vmem>>, vector<8x768xf32>,
    %cst_1 = arith.constant 0.000000e+00 : f32
    %2 = vector.broadcast %cst_1 : f32 to vector<8x768xf32>
    %c0_2 = arith.constant 0 : index
    %c0_3 = arith.constant 0 : index
    %3 = vector.load %arg12[%c0_2, %c0_3] : memref<8x768xf32, #tpu.memory_space<vmem>>, vector<8x768xf32>
    tpu.vector_store %arg12[%c0_2, %c0_3], %2 {strides = array<i32>} : memref<8x768xf32, #tpu.memory_space<vmem>>, vector<8x768xf32>,
    %cst_4 = arith.constant 0.000000e+00 : f32
    %4 = vector.broadcast %cst_4 : f32 to vector<8x384xf32>
    %c0_5 = arith.constant 0 : index
    %c0_6 = arith.constant 0 : index
    %5 = vector.load %arg13[%c0_5, %c0_6] : memref<8x384xf32, #tpu.memory_space<vmem>>, vector<8x384xf32>
    tpu.vector_store %arg13[%c0_5, %c0_6], %4 {strides = array<i32>} : memref<8x384xf32, #tpu.memory_space<vmem>>, vector<8x384xf32>,
    %c0_7 = arith.constant 0 : index
    %c0_8 = arith.constant 0 : index
    %6 = vector.load %arg1[%c0_7, %c0_8] : memref<8x256xf32, #tpu.memory_space<vmem>>, vector<8x256xf32>
    %7 = vector.extract_strided_slice %6 {offsets = [0, 0], sizes = [3, 256], strides = [1, 1]} : vector<8x256xf32> to vector<3x256xf32>
    %c1 = arith.constant 1 : index
    %c0_9 = arith.constant 0 : index
    %8 = vector.load %arg11[%c1, %c0_9] : memref<8x768xf32, #tpu.memory_space<vmem>>, vector<3x256xf32>
    tpu.vector_store %arg11[%c1, %c0_9], %7 {strides = array<i32>} : memref<8x768xf32, #tpu.memory_space<vmem>>, vector<3x256xf32>,
    %9 = vector.extract_strided_slice %6 {offsets = [0, 0], sizes = [4, 256], strides = [1, 1]} : vector<8x256xf32> to vector<4x256xf32>
    %c0_10 = arith.constant 0 : index
    %c256 = arith.constant 256 : index
    %10 = vector.load %arg11[%c0_10, %c256] : memref<8x768xf32, #tpu.memory_space<vmem>>, vector<4x256xf32>
    tpu.vector_store %arg11[%c0_10, %c256], %9 {strides = array<i32>} : memref<8x768xf32, #tpu.memory_space<vmem>>, vector<4x256xf32>,
    %11 = vector.extract_strided_slice %6 {offsets = [1, 0], sizes = [3, 256], strides = [1, 1]} : vector<8x256xf32> to vector<3x256xf32>
    %c0_11 = arith.constant 0 : index
    %c512 = arith.constant 512 : index
    %12 = vector.load %arg11[%c0_11, %c512] : memref<8x768xf32, #tpu.memory_space<vmem>>, vector<3x256xf32>
    tpu.vector_store %arg11[%c0_11, %c512], %11 {strides = array<i32>} : memref<8x768xf32, #tpu.memory_space<vmem>>, vector<3x256xf32>,
    %13 = vector.extract_strided_slice %6 {offsets = [4, 0], sizes = [3, 256], strides = [1, 1]} : vector<8x256xf32> to vector<3x256xf32>
    %c5 = arith.constant 5 : index
    %c0_12 = arith.constant 0 : index
    %14 = vector.load %arg11[%c5, %c0_12] : memref<8x768xf32, #tpu.memory_space<vmem>>, vector<3x256xf32>
    tpu.vector_store %arg11[%c5, %c0_12], %13 {strides = array<i32>} : memref<8x768xf32, #tpu.memory_space<vmem>>, vector<3x256xf32>,
    %15 = vector.extract_strided_slice %6 {offsets = [4, 0], sizes = [4, 256], strides = [1, 1]} : vector<8x256xf32> to vector<4x256xf32>
    %c4 = arith.constant 4 : index
    %c256_13 = arith.constant 256 : index
    %16 = vector.load %arg11[%c4, %c256_13] : memref<8x768xf32, #tpu.memory_space<vmem>>, vector<4x256xf32>
    tpu.vector_store %arg11[%c4, %c256_13], %15 {strides = array<i32>} : memref<8x768xf32, #tpu.memory_space<vmem>>, vector<4x256xf32>,
    %17 = vector.extract_strided_slice %6 {offsets = [5, 0], sizes = [3, 256], strides = [1, 1]} : vector<8x256xf32> to vector<3x256xf32>
    %c4_14 = arith.constant 4 : index
    %c512_15 = arith.constant 512 : index
    %18 = vector.load %arg11[%c4_14, %c512_15] : memref<8x768xf32, #tpu.memory_space<vmem>>, vector<3x256xf32>
    tpu.vector_store %arg11[%c4_14, %c512_15], %17 {strides = array<i32>} : memref<8x768xf32, #tpu.memory_space<vmem>>, vector<3x256xf32>,
    %c0_16 = arith.constant 0 : index
    %c0_17 = arith.constant 0 : index
    %19 = vector.load %arg11[%c0_16, %c0_17] : memref<8x768xf32, #tpu.memory_space<vmem>>, vector<8x768xf32>
    %20 = arith.truncf %19 : vector<8x768xf32> to vector<8x768xbf16>
    %c0_18 = arith.constant 0 : index
    %c0_19 = arith.constant 0 : index
    %21 = vector.load %arg2[%c0_18, %c0_19] : memref<768x256xbf16, #tpu.memory_space<vmem>>, vector<768x256xbf16>
    %cst_20 = arith.constant dense<0.000000e+00> : vector<8x256xf32>
    %22 = tpu.matmul %20, %21, %cst_20 {dimension_numbers = #tpu.dot_dimension_numbers<[1], [0], [0], [1], [0, 0, 1, 1], [], []>} : vector<8x768xbf16>, vector<768x256xbf16>, vector<8x256xf32> -> vector<8x256xf32>
    %c0_21 = arith.constant 0 : index
    %c0_22 = arith.constant 0 : index
    %23 = vector.load %arg3[%c0_21, %c0_22] : memref<1x256xf32, #tpu.memory_space<vmem>>, vector<1x256xf32>
    %24 = vector.broadcast %23 : vector<1x256xf32> to vector<8x256xf32>
    %25 = arith.addf %22, %24 : vector<8x256xf32>
    %cst_23 = arith.constant 0.000000e+00 : f32
    %26 = vector.broadcast %cst_23 : f32 to vector<8x256xf32>
    %27 = arith.maximumf %25, %26 : vector<8x256xf32>
    %28 = vector.extract_strided_slice %27 {offsets = [0, 0], sizes = [3, 256], strides = [1, 1]} : vector<8x256xf32> to vector<3x256xf32>
    %c1_24 = arith.constant 1 : index
    %c0_25 = arith.constant 0 : index
    %29 = vector.load %arg12[%c1_24, %c0_25] : memref<8x768xf32, #tpu.memory_space<vmem>>, vector<3x256xf32>
    tpu.vector_store %arg12[%c1_24, %c0_25], %28 {strides = array<i32>} : memref<8x768xf32, #tpu.memory_space<vmem>>, vector<3x256xf32>,
    %30 = vector.extract_strided_slice %27 {offsets = [0, 0], sizes = [4, 256], strides = [1, 1]} : vector<8x256xf32> to vector<4x256xf32>
    %c0_26 = arith.constant 0 : index
    %c256_27 = arith.constant 256 : index
    %31 = vector.load %arg12[%c0_26, %c256_27] : memref<8x768xf32, #tpu.memory_space<vmem>>, vector<4x256xf32>
    tpu.vector_store %arg12[%c0_26, %c256_27], %30 {strides = array<i32>} : memref<8x768xf32, #tpu.memory_space<vmem>>, vector<4x256xf32>,
    %32 = vector.extract_strided_slice %27 {offsets = [1, 0], sizes = [3, 256], strides = [1, 1]} : vector<8x256xf32> to vector<3x256xf32>
    %c0_28 = arith.constant 0 : index
    %c512_29 = arith.constant 512 : index
    %33 = vector.load %arg12[%c0_28, %c512_29] : memref<8x768xf32, #tpu.memory_space<vmem>>, vector<3x256xf32>
    tpu.vector_store %arg12[%c0_28, %c512_29], %32 {strides = array<i32>} : memref<8x768xf32, #tpu.memory_space<vmem>>, vector<3x256xf32>,
    %34 = vector.extract_strided_slice %27 {offsets = [4, 0], sizes = [3, 256], strides = [1, 1]} : vector<8x256xf32> to vector<3x256xf32>
    %c5_30 = arith.constant 5 : index
    %c0_31 = arith.constant 0 : index
    %35 = vector.load %arg12[%c5_30, %c0_31] : memref<8x768xf32, #tpu.memory_space<vmem>>, vector<3x256xf32>
    tpu.vector_store %arg12[%c5_30, %c0_31], %34 {strides = array<i32>} : memref<8x768xf32, #tpu.memory_space<vmem>>, vector<3x256xf32>,
    %36 = vector.extract_strided_slice %27 {offsets = [4, 0], sizes = [4, 256], strides = [1, 1]} : vector<8x256xf32> to vector<4x256xf32>
    %c4_32 = arith.constant 4 : index
    %c256_33 = arith.constant 256 : index
    %37 = vector.load %arg12[%c4_32, %c256_33] : memref<8x768xf32, #tpu.memory_space<vmem>>, vector<4x256xf32>
    tpu.vector_store %arg12[%c4_32, %c256_33], %36 {strides = array<i32>} : memref<8x768xf32, #tpu.memory_space<vmem>>, vector<4x256xf32>,
    %38 = vector.extract_strided_slice %27 {offsets = [5, 0], sizes = [3, 256], strides = [1, 1]} : vector<8x256xf32> to vector<3x256xf32>
    %c4_34 = arith.constant 4 : index
    %c512_35 = arith.constant 512 : index
    %39 = vector.load %arg12[%c4_34, %c512_35] : memref<8x768xf32, #tpu.memory_space<vmem>>, vector<3x256xf32>
    tpu.vector_store %arg12[%c4_34, %c512_35], %38 {strides = array<i32>} : memref<8x768xf32, #tpu.memory_space<vmem>>, vector<3x256xf32>,
    %c0_36 = arith.constant 0 : index
    %c0_37 = arith.constant 0 : index
    %40 = vector.load %arg12[%c0_36, %c0_37] : memref<8x768xf32, #tpu.memory_space<vmem>>, vector<8x768xf32>
    %41 = arith.truncf %40 : vector<8x768xf32> to vector<8x768xbf16>
    %c0_38 = arith.constant 0 : index
    %c0_39 = arith.constant 0 : index
    %42 = vector.load %arg4[%c0_38, %c0_39] : memref<768x128xbf16, #tpu.memory_space<vmem>>, vector<768x128xbf16>
    %cst_40 = arith.constant dense<0.000000e+00> : vector<8x128xf32>
    %43 = tpu.matmul %41, %42, %cst_40 {dimension_numbers = #tpu.dot_dimension_numbers<[1], [0], [0], [1], [0, 0, 1, 1], [], []>} : vector<8x768xbf16>, vector<768x128xbf16>, vector<8x128xf32> -> vector<8x128xf32>
    %c0_41 = arith.constant 0 : index
    %c0_42 = arith.constant 0 : index
    %44 = vector.load %arg5[%c0_41, %c0_42] : memref<1x128xf32, #tpu.memory_space<vmem>>, vector<1x128xf32>
    %45 = vector.broadcast %44 : vector<1x128xf32> to vector<8x128xf32>
    %46 = arith.addf %43, %45 : vector<8x128xf32>
    %cst_43 = arith.constant 0.000000e+00 : f32
    %47 = vector.broadcast %cst_43 : f32 to vector<8x128xf32>
    %48 = arith.maximumf %46, %47 : vector<8x128xf32>
    %49 = vector.extract_strided_slice %48 {offsets = [0, 0], sizes = [3, 128], strides = [1, 1]} : vector<8x128xf32> to vector<3x128xf32>
    %c1_44 = arith.constant 1 : index
    %c0_45 = arith.constant 0 : index
    %50 = vector.load %arg13[%c1_44, %c0_45] : memref<8x384xf32, #tpu.memory_space<vmem>>, vector<3x128xf32>
    tpu.vector_store %arg13[%c1_44, %c0_45], %49 {strides = array<i32>} : memref<8x384xf32, #tpu.memory_space<vmem>>, vector<3x128xf32>,
    %51 = vector.extract_strided_slice %48 {offsets = [0, 0], sizes = [4, 128], strides = [1, 1]} : vector<8x128xf32> to vector<4x128xf32>
    %c0_46 = arith.constant 0 : index
    %c128 = arith.constant 128 : index
    %52 = vector.load %arg13[%c0_46, %c128] : memref<8x384xf32, #tpu.memory_space<vmem>>, vector<4x128xf32>
    tpu.vector_store %arg13[%c0_46, %c128], %51 {strides = array<i32>} : memref<8x384xf32, #tpu.memory_space<vmem>>, vector<4x128xf32>,
    %53 = vector.extract_strided_slice %48 {offsets = [1, 0], sizes = [3, 128], strides = [1, 1]} : vector<8x128xf32> to vector<3x128xf32>
    %c0_47 = arith.constant 0 : index
    %c256_48 = arith.constant 256 : index
    %54 = vector.load %arg13[%c0_47, %c256_48] : memref<8x384xf32, #tpu.memory_space<vmem>>, vector<3x128xf32>
    tpu.vector_store %arg13[%c0_47, %c256_48], %53 {strides = array<i32>} : memref<8x384xf32, #tpu.memory_space<vmem>>, vector<3x128xf32>,
    %55 = vector.extract_strided_slice %48 {offsets = [4, 0], sizes = [3, 128], strides = [1, 1]} : vector<8x128xf32> to vector<3x128xf32>
    %c5_49 = arith.constant 5 : index
    %c0_50 = arith.constant 0 : index
    %56 = vector.load %arg13[%c5_49, %c0_50] : memref<8x384xf32, #tpu.memory_space<vmem>>, vector<3x128xf32>
    tpu.vector_store %arg13[%c5_49, %c0_50], %55 {strides = array<i32>} : memref<8x384xf32, #tpu.memory_space<vmem>>, vector<3x128xf32>,
    %57 = vector.extract_strided_slice %48 {offsets = [4, 0], sizes = [4, 128], strides = [1, 1]} : vector<8x128xf32> to vector<4x128xf32>
    %c4_51 = arith.constant 4 : index
    %c128_52 = arith.constant 128 : index
    %58 = vector.load %arg13[%c4_51, %c128_52] : memref<8x384xf32, #tpu.memory_space<vmem>>, vector<4x128xf32>
    tpu.vector_store %arg13[%c4_51, %c128_52], %57 {strides = array<i32>} : memref<8x384xf32, #tpu.memory_space<vmem>>, vector<4x128xf32>,
    %59 = vector.extract_strided_slice %48 {offsets = [5, 0], sizes = [3, 128], strides = [1, 1]} : vector<8x128xf32> to vector<3x128xf32>
    %c4_53 = arith.constant 4 : index
    %c256_54 = arith.constant 256 : index
    %60 = vector.load %arg13[%c4_53, %c256_54] : memref<8x384xf32, #tpu.memory_space<vmem>>, vector<3x128xf32>
    tpu.vector_store %arg13[%c4_53, %c256_54], %59 {strides = array<i32>} : memref<8x384xf32, #tpu.memory_space<vmem>>, vector<3x128xf32>,
    %c0_55 = arith.constant 0 : index
    %c0_56 = arith.constant 0 : index
    %61 = vector.load %arg13[%c0_55, %c0_56] : memref<8x384xf32, #tpu.memory_space<vmem>>, vector<8x384xf32>
    %62 = arith.truncf %61 : vector<8x384xf32> to vector<8x384xbf16>
    %c0_57 = arith.constant 0 : index
    %c0_58 = arith.constant 0 : index
    %63 = vector.load %arg6[%c0_57, %c0_58] : memref<384x128xbf16, #tpu.memory_space<vmem>>, vector<384x128xbf16>
    %cst_59 = arith.constant dense<0.000000e+00> : vector<8x128xf32>
    %64 = tpu.matmul %62, %63, %cst_59 {dimension_numbers = #tpu.dot_dimension_numbers<[1], [0], [0], [1], [0, 0, 1, 1], [], []>} : vector<8x384xbf16>, vector<384x128xbf16>, vector<8x128xf32> -> vector<8x128xf32>
    %c0_60 = arith.constant 0 : index
    %c0_61 = arith.constant 0 : index
    %65 = vector.load %arg7[%c0_60, %c0_61] : memref<1x128xf32, #tpu.memory_space<vmem>>, vector<1x128xf32>
    %66 = vector.broadcast %65 : vector<1x128xf32> to vector<8x128xf32>
    %67 = arith.addf %64, %66 : vector<8x128xf32>
    %cst_62 = arith.constant 0.000000e+00 : f32
    %68 = vector.broadcast %cst_62 : f32 to vector<8x128xf32>
    %69 = arith.maximumf %67, %68 : vector<8x128xf32>
    %70 = vector.extract_strided_slice %69 {offsets = [0, 0], sizes = [3, 128], strides = [1, 1]} : vector<8x128xf32> to vector<3x128xf32>
    %c1_63 = arith.constant 1 : index
    %c0_64 = arith.constant 0 : index
    %71 = vector.load %arg13[%c1_63, %c0_64] : memref<8x384xf32, #tpu.memory_space<vmem>>, vector<3x128xf32>
    tpu.vector_store %arg13[%c1_63, %c0_64], %70 {strides = array<i32>} : memref<8x384xf32, #tpu.memory_space<vmem>>, vector<3x128xf32>,
    %72 = vector.extract_strided_slice %69 {offsets = [0, 0], sizes = [4, 128], strides = [1, 1]} : vector<8x128xf32> to vector<4x128xf32>
    %c0_65 = arith.constant 0 : index
    %c128_66 = arith.constant 128 : index
    %73 = vector.load %arg13[%c0_65, %c128_66] : memref<8x384xf32, #tpu.memory_space<vmem>>, vector<4x128xf32>
    tpu.vector_store %arg13[%c0_65, %c128_66], %72 {strides = array<i32>} : memref<8x384xf32, #tpu.memory_space<vmem>>, vector<4x128xf32>,
    %74 = vector.extract_strided_slice %69 {offsets = [1, 0], sizes = [3, 128], strides = [1, 1]} : vector<8x128xf32> to vector<3x128xf32>
    %c0_67 = arith.constant 0 : index
    %c256_68 = arith.constant 256 : index
    %75 = vector.load %arg13[%c0_67, %c256_68] : memref<8x384xf32, #tpu.memory_space<vmem>>, vector<3x128xf32>
    tpu.vector_store %arg13[%c0_67, %c256_68], %74 {strides = array<i32>} : memref<8x384xf32, #tpu.memory_space<vmem>>, vector<3x128xf32>,
    %76 = vector.extract_strided_slice %69 {offsets = [4, 0], sizes = [3, 128], strides = [1, 1]} : vector<8x128xf32> to vector<3x128xf32>
    %c5_69 = arith.constant 5 : index
    %c0_70 = arith.constant 0 : index
    %77 = vector.load %arg13[%c5_69, %c0_70] : memref<8x384xf32, #tpu.memory_space<vmem>>, vector<3x128xf32>
    tpu.vector_store %arg13[%c5_69, %c0_70], %76 {strides = array<i32>} : memref<8x384xf32, #tpu.memory_space<vmem>>, vector<3x128xf32>,
    %78 = vector.extract_strided_slice %69 {offsets = [4, 0], sizes = [4, 128], strides = [1, 1]} : vector<8x128xf32> to vector<4x128xf32>
    %c4_71 = arith.constant 4 : index
    %c128_72 = arith.constant 128 : index
    %79 = vector.load %arg13[%c4_71, %c128_72] : memref<8x384xf32, #tpu.memory_space<vmem>>, vector<4x128xf32>
    tpu.vector_store %arg13[%c4_71, %c128_72], %78 {strides = array<i32>} : memref<8x384xf32, #tpu.memory_space<vmem>>, vector<4x128xf32>,
    %80 = vector.extract_strided_slice %69 {offsets = [5, 0], sizes = [3, 128], strides = [1, 1]} : vector<8x128xf32> to vector<3x128xf32>
    %c4_73 = arith.constant 4 : index
    %c256_74 = arith.constant 256 : index
    %81 = vector.load %arg13[%c4_73, %c256_74] : memref<8x384xf32, #tpu.memory_space<vmem>>, vector<3x128xf32>
    tpu.vector_store %arg13[%c4_73, %c256_74], %80 {strides = array<i32>} : memref<8x384xf32, #tpu.memory_space<vmem>>, vector<3x128xf32>,
    %c0_75 = arith.constant 0 : index
    %c0_76 = arith.constant 0 : index
    %82 = vector.load %arg13[%c0_75, %c0_76] : memref<8x384xf32, #tpu.memory_space<vmem>>, vector<8x384xf32>
    %83 = arith.truncf %82 : vector<8x384xf32> to vector<8x384xbf16>
    %c0_77 = arith.constant 0 : index
    %c0_78 = arith.constant 0 : index
    %c0_79 = arith.constant 0 : index
    %84 = vector.load %arg8[%c0_77, %c0_78, %c0_79] : memref<2x384x32xbf16, #tpu.memory_space<vmem>>, vector<1x384x32xbf16>
    %85 = vector.shape_cast %84 : vector<1x384x32xbf16> to vector<384x32xbf16>
    %cst_80 = arith.constant dense<0.000000e+00> : vector<8x32xf32>
    %86 = tpu.matmul %83, %85, %cst_80 {dimension_numbers = #tpu.dot_dimension_numbers<[1], [0], [0], [1], [0, 0, 1, 1], [], []>} : vector<8x384xbf16>, vector<384x32xbf16>, vector<8x32xf32> -> vector<8x32xf32>
    %cst_81 = arith.constant 0.000000e+00 : f32
    %87 = vector.broadcast %cst_81 : f32 to vector<8x32xf32>
    %88 = arith.maximumf %86, %87 : vector<8x32xf32>
    %c0_82 = arith.constant 0 : index
    %c0_83 = arith.constant 0 : index
    %c0_84 = arith.constant 0 : index
    %89 = vector.load %arg9[%c0_82, %c0_83, %c0_84] : memref<2x32x128xf32, #tpu.memory_space<vmem>>, vector<1x32x128xf32>
    %90 = vector.shape_cast %89 : vector<1x32x128xf32> to vector<32x128xf32>
    %cst_85 = arith.constant dense<0.000000e+00> : vector<8x128xf32>
    %91 = tpu.matmul %88, %90, %cst_85 {dimension_numbers = #tpu.dot_dimension_numbers<[1], [0], [0], [1], [0, 0, 1, 1], [], []>} : vector<8x32xf32>, vector<32x128xf32>, vector<8x128xf32> -> vector<8x128xf32>
    %92 = arith.addf %67, %91 : vector<8x128xf32>
    %cst_86 = arith.constant 0.000000e+00 : f32
    %93 = vector.broadcast %cst_86 : f32 to vector<8x128xf32>
    %94 = arith.maximumf %92, %93 : vector<8x128xf32>
    %95 = vector.extract_strided_slice %94 {offsets = [0, 0], sizes = [3, 128], strides = [1, 1]} : vector<8x128xf32> to vector<3x128xf32>
    %c1_87 = arith.constant 1 : index
    %c0_88 = arith.constant 0 : index
    %96 = vector.load %arg13[%c1_87, %c0_88] : memref<8x384xf32, #tpu.memory_space<vmem>>, vector<3x128xf32>
    tpu.vector_store %arg13[%c1_87, %c0_88], %95 {strides = array<i32>} : memref<8x384xf32, #tpu.memory_space<vmem>>, vector<3x128xf32>,
    %97 = vector.extract_strided_slice %94 {offsets = [0, 0], sizes = [4, 128], strides = [1, 1]} : vector<8x128xf32> to vector<4x128xf32>
    %c0_89 = arith.constant 0 : index
    %c128_90 = arith.constant 128 : index
    %98 = vector.load %arg13[%c0_89, %c128_90] : memref<8x384xf32, #tpu.memory_space<vmem>>, vector<4x128xf32>
    tpu.vector_store %arg13[%c0_89, %c128_90], %97 {strides = array<i32>} : memref<8x384xf32, #tpu.memory_space<vmem>>, vector<4x128xf32>,
    %99 = vector.extract_strided_slice %94 {offsets = [1, 0], sizes = [3, 128], strides = [1, 1]} : vector<8x128xf32> to vector<3x128xf32>
    %c0_91 = arith.constant 0 : index
    %c256_92 = arith.constant 256 : index
    %100 = vector.load %arg13[%c0_91, %c256_92] : memref<8x384xf32, #tpu.memory_space<vmem>>, vector<3x128xf32>
    tpu.vector_store %arg13[%c0_91, %c256_92], %99 {strides = array<i32>} : memref<8x384xf32, #tpu.memory_space<vmem>>, vector<3x128xf32>,
    %101 = vector.extract_strided_slice %94 {offsets = [4, 0], sizes = [3, 128], strides = [1, 1]} : vector<8x128xf32> to vector<3x128xf32>
    %c5_93 = arith.constant 5 : index
    %c0_94 = arith.constant 0 : index
    %102 = vector.load %arg13[%c5_93, %c0_94] : memref<8x384xf32, #tpu.memory_space<vmem>>, vector<3x128xf32>
    tpu.vector_store %arg13[%c5_93, %c0_94], %101 {strides = array<i32>} : memref<8x384xf32, #tpu.memory_space<vmem>>, vector<3x128xf32>,
    %103 = vector.extract_strided_slice %94 {offsets = [4, 0], sizes = [4, 128], strides = [1, 1]} : vector<8x128xf32> to vector<4x128xf32>
    %c4_95 = arith.constant 4 : index
    %c128_96 = arith.constant 128 : index
    %104 = vector.load %arg13[%c4_95, %c128_96] : memref<8x384xf32, #tpu.memory_space<vmem>>, vector<4x128xf32>
    tpu.vector_store %arg13[%c4_95, %c128_96], %103 {strides = array<i32>} : memref<8x384xf32, #tpu.memory_space<vmem>>, vector<4x128xf32>,
    %105 = vector.extract_strided_slice %94 {offsets = [5, 0], sizes = [3, 128], strides = [1, 1]} : vector<8x128xf32> to vector<3x128xf32>
    %c4_97 = arith.constant 4 : index
    %c256_98 = arith.constant 256 : index
    %106 = vector.load %arg13[%c4_97, %c256_98] : memref<8x384xf32, #tpu.memory_space<vmem>>, vector<3x128xf32>
    tpu.vector_store %arg13[%c4_97, %c256_98], %105 {strides = array<i32>} : memref<8x384xf32, #tpu.memory_space<vmem>>, vector<3x128xf32>,
    %c0_99 = arith.constant 0 : index
    %c0_100 = arith.constant 0 : index
    %107 = vector.load %arg13[%c0_99, %c0_100] : memref<8x384xf32, #tpu.memory_space<vmem>>, vector<8x384xf32>
    %108 = arith.truncf %107 : vector<8x384xf32> to vector<8x384xbf16>
    %c1_101 = arith.constant 1 : index
    %c0_102 = arith.constant 0 : index
    %c0_103 = arith.constant 0 : index
    %109 = vector.load %arg8[%c1_101, %c0_102, %c0_103] : memref<2x384x32xbf16, #tpu.memory_space<vmem>>, vector<1x384x32xbf16>
    %110 = vector.shape_cast %109 : vector<1x384x32xbf16> to vector<384x32xbf16>
    %cst_104 = arith.constant dense<0.000000e+00> : vector<8x32xf32>
    %111 = tpu.matmul %108, %110, %cst_104 {dimension_numbers = #tpu.dot_dimension_numbers<[1], [0], [0], [1], [0, 0, 1, 1], [], []>} : vector<8x384xbf16>, vector<384x32xbf16>, vector<8x32xf32> -> vector<8x32xf32>
    %cst_105 = arith.constant 0.000000e+00 : f32
    %112 = vector.broadcast %cst_105 : f32 to vector<8x32xf32>
    %113 = arith.maximumf %111, %112 : vector<8x32xf32>
    %c1_106 = arith.constant 1 : index
    %c0_107 = arith.constant 0 : index
    %c0_108 = arith.constant 0 : index
    %114 = vector.load %arg9[%c1_106, %c0_107, %c0_108] : memref<2x32x128xf32, #tpu.memory_space<vmem>>, vector<1x32x128xf32>
    %115 = vector.shape_cast %114 : vector<1x32x128xf32> to vector<32x128xf32>
    %cst_109 = arith.constant dense<0.000000e+00> : vector<8x128xf32>
    %116 = tpu.matmul %113, %115, %cst_109 {dimension_numbers = #tpu.dot_dimension_numbers<[1], [0], [0], [1], [0, 0, 1, 1], [], []>} : vector<8x32xf32>, vector<32x128xf32>, vector<8x128xf32> -> vector<8x128xf32>
    %117 = arith.addf %92, %116 : vector<8x128xf32>
    %cst_110 = arith.constant 0.000000e+00 : f32
    %118 = vector.broadcast %cst_110 : f32 to vector<8x128xf32>
    %119 = arith.maximumf %117, %118 : vector<8x128xf32>
    %c0_111 = arith.constant 0 : index
    %c0_112 = arith.constant 0 : index
    %120 = vector.load %arg10[%c0_111, %c0_112] : memref<8x128xf32, #tpu.memory_space<vmem>>, vector<8x128xf32>
    tpu.vector_store %arg10[%c0_111, %c0_112], %119 {strides = array<i32>} : memref<8x128xf32, #tpu.memory_space<vmem>>, vector<8x128xf32>,
    return
  }
  func.func @transform_0(%arg0: i32) -> (i32, i32) {
    %c0_i32 = arith.constant 0 : i32
    %c0_i32_0 = arith.constant 0 : i32
    %c0_i32_1 = arith.constant 0 : i32
    return %c0_i32, %c0_i32_0 : i32, i32
  }
  func.func @transform_1(%arg0: i32) -> (i32, i32) {
    %c0_i32 = arith.constant 0 : i32
    %c0_i32_0 = arith.constant 0 : i32
    %c0_i32_1 = arith.constant 0 : i32
    return %c0_i32, %c0_i32_0 : i32, i32
  }
  func.func @transform_2(%arg0: i32) -> (i32, i32) {
    %c0_i32 = arith.constant 0 : i32
    %c0_i32_0 = arith.constant 0 : i32
    %c0_i32_1 = arith.constant 0 : i32
    return %c0_i32, %c0_i32_0 : i32, i32
  }
  func.func @transform_3(%arg0: i32) -> (i32, i32) {
    %c0_i32 = arith.constant 0 : i32
    %c0_i32_0 = arith.constant 0 : i32
    %c0_i32_1 = arith.constant 0 : i32
    return %c0_i32, %c0_i32_0 : i32, i32
  }
  func.func @transform_4(%arg0: i32) -> (i32, i32) {
    %c0_i32 = arith.constant 0 : i32
    %c0_i32_0 = arith.constant 0 : i32
    %c0_i32_1 = arith.constant 0 : i32
    return %c0_i32, %c0_i32_0 : i32, i32
  }
  func.func @transform_5(%arg0: i32) -> (i32, i32) {
    %c0_i32 = arith.constant 0 : i32
    %c0_i32_0 = arith.constant 0 : i32
    %c0_i32_1 = arith.constant 0 : i32
    return %c0_i32, %c0_i32_0 : i32, i32
  }
  func.func @transform_6(%arg0: i32) -> (i32, i32) {
    %c0_i32 = arith.constant 0 : i32
    %c0_i32_0 = arith.constant 0 : i32
    %c0_i32_1 = arith.constant 0 : i32
    return %c0_i32, %c0_i32_0 : i32, i32
  }
  func.func @transform_7(%arg0: i32) -> (i32, i32, i32) {
    %c0_i32 = arith.constant 0 : i32
    %c0_i32_0 = arith.constant 0 : i32
    %c0_i32_1 = arith.constant 0 : i32
    %c0_i32_2 = arith.constant 0 : i32
    return %c0_i32, %c0_i32_0, %c0_i32_1 : i32, i32, i32
  }
  func.func @transform_8(%arg0: i32) -> (i32, i32, i32) {
    %c0_i32 = arith.constant 0 : i32
    %c0_i32_0 = arith.constant 0 : i32
    %c0_i32_1 = arith.constant 0 : i32
    %c0_i32_2 = arith.constant 0 : i32
    return %c0_i32, %c0_i32_0, %c0_i32_1 : i32, i32, i32
  }
  func.func @transform_9(%arg0: i32) -> (i32, i32) {
    %c0_i32 = arith.constant 0 : i32
    %c0_i32_0 = arith.constant 0 : i32
    %c0_i32_1 = arith.constant 0 : i32
    return %c0_i32, %c0_i32_0 : i32, i32
  }
}

</mosaic_0001>

<llo_original>
// kernel: encoder1_forward.1
$region0: #{encoder1_forward.1}
  #allocation0 [shape = 'u32[]', space=smem, size = 0x4, offset = 0x4, fixed_abs, tag = 'smem constant byte address 0x4 - core index']
  #allocation1 [shape = 'u32[72,128]{1,0:T(1,128)}', space=vmem, size = 0x9000, scoped, tag = 'internal scratch']
  #allocation2 [shape = 'f32[8,768]{1,0:T(8,128)}', space=vmem, size = 0x6000, scoped, tag = 'scratch operand']
  #allocation3 [shape = 'f32[8,768]{1,0:T(8,128)}', space=vmem, size = 0x6000, scoped, tag = 'scratch operand']
  #allocation4 [shape = 'f32[8,384]{1,0:T(8,128)}', space=vmem, size = 0x3000, scoped, tag = 'scratch operand']
  %s0 = inlined_call_operand.vmem [shape: f32[8,256], index: 0, kind: input, shape index: {}]
  %s1 = inlined_call_operand.vmem [shape: bf16[768,256], index: 1, kind: input, shape index: {}]
  %s2 = inlined_call_operand.vmem [shape: f32[1,256], index: 2, kind: input, shape index: {}]
  %s3 = inlined_call_operand.vmem [shape: bf16[768,128], index: 3, kind: input, shape index: {}]
  %s4 = inlined_call_operand.vmem [shape: f32[1,128], index: 4, kind: input, shape index: {}]
  %s5 = inlined_call_operand.vmem [shape: bf16[384,128], index: 5, kind: input, shape index: {}]
  %s6 = inlined_call_operand.vmem [shape: f32[1,128], index: 6, kind: input, shape index: {}]
  %s7 = inlined_call_operand.vmem [shape: bf16[2,384,32], index: 7, kind: input, shape index: {}]
  %s8 = inlined_call_operand.vmem [shape: f32[2,32,128], index: 8, kind: input, shape index: {}]
  %s9 = inlined_call_operand.vmem [shape: f32[8,128], index: 9, kind: output, shape index: {}]
  %s10 = sld [smem:[#allocation0]]
  $region46: #{encoder1_forward.1} parent=0
    _
  %s12 = ssub.s32 1, %s10
  %s13 = scalar_select 0, %s12, %s10
  // Predicated region
  $region2: #{encoder1_forward.1} parent=0 // pred_check
    _
  $region3: #{encoder1_forward.1} parent=0 // pred_check_branch
    %15 = sbr.rel (0) target = $region5
  $region4: #{encoder1_forward.1} parent=0 // pred_region
    _
  $region5: #{encoder1_forward.1} parent=0 // pred_fallthru
    _
  // Predicated region
  $region6: #{encoder1_forward.1} parent=0 // pred_check
    _
  $region7: #{encoder1_forward.1} parent=0 // pred_check_branch
    %17 = sbr.rel (0) target = $region9
  $region8: #{encoder1_forward.1} parent=0 // pred_region
    _
  $region9: #{encoder1_forward.1} parent=0 // pred_fallthru
    _
  // Predicated region
  $region10: #{encoder1_forward.1} parent=0 // pred_check
    _
  $region11: #{encoder1_forward.1} parent=0 // pred_check_branch
    %19 = sbr.rel (0) target = $region13
  $region12: #{encoder1_forward.1} parent=0 // pred_region
    _
  $region13: #{encoder1_forward.1} parent=0 // pred_fallthru
    _
  // Predicated region
  $region14: #{encoder1_forward.1} parent=0 // pred_check
    _
  $region15: #{encoder1_forward.1} parent=0 // pred_check_branch
    %21 = sbr.rel (0) target = $region17
  $region16: #{encoder1_forward.1} parent=0 // pred_region
    _
  $region17: #{encoder1_forward.1} parent=0 // pred_fallthru
    _
  // Predicated region
  $region18: #{encoder1_forward.1} parent=0 // pred_check
    _
  $region19: #{encoder1_forward.1} parent=0 // pred_check_branch
    %23 = sbr.rel (0) target = $region21
  $region20: #{encoder1_forward.1} parent=0 // pred_region
    _
  $region21: #{encoder1_forward.1} parent=0 // pred_fallthru
    _
  // Predicated region
  $region22: #{encoder1_forward.1} parent=0 // pred_check
    _
  $region23: #{encoder1_forward.1} parent=0 // pred_check_branch
    %25 = sbr.rel (0) target = $region25
  $region24: #{encoder1_forward.1} parent=0 // pred_region
    _
  $region25: #{encoder1_forward.1} parent=0 // pred_fallthru
    _
  // Predicated region
  $region26: #{encoder1_forward.1} parent=0 // pred_check
    _
  $region27: #{encoder1_forward.1} parent=0 // pred_check_branch
    %27 = sbr.rel (0) target = $region29
  $region28: #{encoder1_forward.1} parent=0 // pred_region
    _
  $region29: #{encoder1_forward.1} parent=0 // pred_fallthru
    _
  // Predicated region
  $region30: #{encoder1_forward.1} parent=0 // pred_check
    _
  $region31: #{encoder1_forward.1} parent=0 // pred_check_branch
    %29 = sbr.rel (0) target = $region33
  $region32: #{encoder1_forward.1} parent=0 // pred_region
    _
  $region33: #{encoder1_forward.1} parent=0 // pred_fallthru
    _
  // Predicated region
  $region34: #{encoder1_forward.1} parent=0 // pred_check
    _
  $region35: #{encoder1_forward.1} parent=0 // pred_check_branch
    %31 = sbr.rel (0) target = $region37
  $region36: #{encoder1_forward.1} parent=0 // pred_region
    _
  $region37: #{encoder1_forward.1} parent=0 // pred_fallthru
    _
  %32 = vst [vmem:[#allocation2] sm:$0xff] 0.0
  %33 = vst [vmem:[#allocation2 + $0x8] sm:$0xff] 0.0
  %34 = vst [vmem:[#allocation2 + $0x10] sm:$0xff] 0.0
  %35 = vst [vmem:[#allocation2 + $0x18] sm:$0xff] 0.0
  %36 = vst [vmem:[#allocation2 + $0x20] sm:$0xff] 0.0
  %37 = vst [vmem:[#allocation2 + $0x28] sm:$0xff] 0.0
  %38 = vst [vmem:[#allocation3] sm:$0xff] 0.0
  %39 = vst [vmem:[#allocation3 + $0x8] sm:$0xff] 0.0
  %40 = vst [vmem:[#allocation3 + $0x10] sm:$0xff] 0.0
  %41 = vst [vmem:[#allocation3 + $0x18] sm:$0xff] 0.0
  %42 = vst [vmem:[#allocation3 + $0x20] sm:$0xff] 0.0
  %43 = vst [vmem:[#allocation3 + $0x28] sm:$0xff] 0.0
  %44 = vst [vmem:[#allocation4] sm:$0xff] 0.0
  %45 = vst [vmem:[#allocation4 + $0x8] sm:$0xff] 0.0
  %46 = vst [vmem:[#allocation4 + $0x10] sm:$0xff] 0.0
  %v47 = vld [vmem:[%s0] sm:$0xff]
  %v48 = vld [vmem:[%s0 + $0x8] sm:$0xff]
  %v51 = vrot.slane %v47, 7
  %v52 = vrot.slane %v48, 7
  %55 = vst [vmem:[#allocation2] sm:$0xe] %v51
  %56 = vst [vmem:[#allocation2 + $0x8] sm:$0xe] %v52
  %57 = vst [vmem:[#allocation2 + $0x10] sm:$0xf] %v47
  %58 = vst [vmem:[#allocation2 + $0x18] sm:$0xf] %v48
  %v59 = vrot.slane %v47, 1
  %v60 = vrot.slane %v48, 1
  %63 = vst [vmem:[#allocation2 + $0x20] sm:$0x7] %v59
  %64 = vst [vmem:[#allocation2 + $0x28] sm:$0x7] %v60
  %65 = vst [vmem:[#allocation2] sm:$0xe0] %v51
  %66 = vst [vmem:[#allocation2 + $0x8] sm:$0xe0] %v52
  %67 = vst [vmem:[#allocation2 + $0x10] sm:$0xf0] %v47
  %68 = vst [vmem:[#allocation2 + $0x18] sm:$0xf0] %v48
  %69 = vst [vmem:[#allocation2 + $0x20] sm:$0x70] %v59
  %70 = vst [vmem:[#allocation2 + $0x28] sm:$0x70] %v60
  %v71 = vld [vmem:[#allocation2] sm:$0xff]
  %v72 = vld [vmem:[#allocation2 + $0x8] sm:$0xff]
  %v73 = vld [vmem:[#allocation2 + $0x10] sm:$0xff]
  %v74 = vld [vmem:[#allocation2 + $0x18] sm:$0xff]
  %v75 = vld [vmem:[#allocation2 + $0x20] sm:$0xff]
  %v76 = vld [vmem:[#allocation2 + $0x28] sm:$0xff]
  %v77 = vpack.c.bf16 %v71, %v71
  %v78 = vpack.c.bf16 %v72, %v72
  %v79 = vpack.c.bf16 %v73, %v73
  %v80 = vpack.c.bf16 %v74, %v74
  %v81 = vpack.c.bf16 %v75, %v75
  %v82 = vpack.c.bf16 %v76, %v76
  %v83 = vld [vmem:[%s1] sm:$0xff]
  %v84 = vld [vmem:[%s1 + $0x8] sm:$0xff]
  %v85 = vld [vmem:[%s1 + $0x10] sm:$0xff]
  %v86 = vld [vmem:[%s1 + $0x18] sm:$0xff]
  %v87 = vld [vmem:[%s1 + $0x20] sm:$0xff]
  %v88 = vld [vmem:[%s1 + $0x28] sm:$0xff]
  %v89 = vld [vmem:[%s1 + $0x30] sm:$0xff]
  %v90 = vld [vmem:[%s1 + $0x38] sm:$0xff]
  %v91 = vld [vmem:[%s1 + $0x40] sm:$0xff]
  %v92 = vld [vmem:[%s1 + $0x48] sm:$0xff]
  %v93 = vld [vmem:[%s1 + $0x50] sm:$0xff]
  %v94 = vld [vmem:[%s1 + $0x58] sm:$0xff]
  %v95 = vld [vmem:[%s1 + $0x60] sm:$0xff]
  %v96 = vld [vmem:[%s1 + $0x68] sm:$0xff]
  %v97 = vld [vmem:[%s1 + $0x70] sm:$0xff]
  %v98 = vld [vmem:[%s1 + $0x78] sm:$0xff]
  %v99 = vld [vmem:[%s1 + $0x80] sm:$0xff]
  %v100 = vld [vmem:[%s1 + $0x88] sm:$0xff]
  %v101 = vld [vmem:[%s1 + $0x90] sm:$0xff]
  %v102 = vld [vmem:[%s1 + $0x98] sm:$0xff]
  %v103 = vld [vmem:[%s1 + $0xa0] sm:$0xff]
  %v104 = vld [vmem:[%s1 + $0xa8] sm:$0xff]
  %v105 = vld [vmem:[%s1 + $0xb0] sm:$0xff]
  %v106 = vld [vmem:[%s1 + $0xb8] sm:$0xff]
  %v107 = vld [vmem:[%s1 + $0xc0] sm:$0xff]
  %v108 = vld [vmem:[%s1 + $0xc8] sm:$0xff]
  %v109 = vld [vmem:[%s1 + $0xd0] sm:$0xff]
  %v110 = vld [vmem:[%s1 + $0xd8] sm:$0xff]
  %v111 = vld [vmem:[%s1 + $0xe0] sm:$0xff]
  %v112 = vld [vmem:[%s1 + $0xe8] sm:$0xff]
  %v113 = vld [vmem:[%s1 + $0xf0] sm:$0xff]
  %v114 = vld [vmem:[%s1 + $0xf8] sm:$0xff]
  %v115 = vld [vmem:[%s1 + $0x100] sm:$0xff]
  %v116 = vld [vmem:[%s1 + $0x108] sm:$0xff]
  %v117 = vld [vmem:[%s1 + $0x110] sm:$0xff]
  %v118 = vld [vmem:[%s1 + $0x118] sm:$0xff]
  %v119 = vld [vmem:[%s1 + $0x120] sm:$0xff]
  %v120 = vld [vmem:[%s1 + $0x128] sm:$0xff]
  %v121 = vld [vmem:[%s1 + $0x130] sm:$0xff]
  %v122 = vld [vmem:[%s1 + $0x138] sm:$0xff]
  %v123 = vld [vmem:[%s1 + $0x140] sm:$0xff]
  %v124 = vld [vmem:[%s1 + $0x148] sm:$0xff]
  %v125 = vld [vmem:[%s1 + $0x150] sm:$0xff]
  %v126 = vld [vmem:[%s1 + $0x158] sm:$0xff]
  %v127 = vld [vmem:[%s1 + $0x160] sm:$0xff]
  %v128 = vld [vmem:[%s1 + $0x168] sm:$0xff]
  %v129 = vld [vmem:[%s1 + $0x170] sm:$0xff]
  %v130 = vld [vmem:[%s1 + $0x178] sm:$0xff]
  %v131 = vld [vmem:[%s1 + $0x180] sm:$0xff]
  %v132 = vld [vmem:[%s1 + $0x188] sm:$0xff]
  %v133 = vld [vmem:[%s1 + $0x190] sm:$0xff]
  %v134 = vld [vmem:[%s1 + $0x198] sm:$0xff]
  %v135 = vld [vmem:[%s1 + $0x1a0] sm:$0xff]
  %v136 = vld [vmem:[%s1 + $0x1a8] sm:$0xff]
  %v137 = vld [vmem:[%s1 + $0x1b0] sm:$0xff]
  %v138 = vld [vmem:[%s1 + $0x1b8] sm:$0xff]
  %v139 = vld [vmem:[%s1 + $0x1c0] sm:$0xff]
  %v140 = vld [vmem:[%s1 + $0x1c8] sm:$0xff]
  %v141 = vld [vmem:[%s1 + $0x1d0] sm:$0xff]
  %v142 = vld [vmem:[%s1 + $0x1d8] sm:$0xff]
  %v143 = vld [vmem:[%s1 + $0x1e0] sm:$0xff]
  %v144 = vld [vmem:[%s1 + $0x1e8] sm:$0xff]
  %v145 = vld [vmem:[%s1 + $0x1f0] sm:$0xff]
  %v146 = vld [vmem:[%s1 + $0x1f8] sm:$0xff]
  %v147 = vld [vmem:[%s1 + $0x200] sm:$0xff]
  %v148 = vld [vmem:[%s1 + $0x208] sm:$0xff]
  %v149 = vld [vmem:[%s1 + $0x210] sm:$0xff]
  %v150 = vld [vmem:[%s1 + $0x218] sm:$0xff]
  %v151 = vld [vmem:[%s1 + $0x220] sm:$0xff]
  %v152 = vld [vmem:[%s1 + $0x228] sm:$0xff]
  %v153 = vld [vmem:[%s1 + $0x230] sm:$0xff]
  %v154 = vld [vmem:[%s1 + $0x238] sm:$0xff]
  %v155 = vld [vmem:[%s1 + $0x240] sm:$0xff]
  %v156 = vld [vmem:[%s1 + $0x248] sm:$0xff]
  %v157 = vld [vmem:[%s1 + $0x250] sm:$0xff]
  %v158 = vld [vmem:[%s1 + $0x258] sm:$0xff]
  %v159 = vld [vmem:[%s1 + $0x260] sm:$0xff]
  %v160 = vld [vmem:[%s1 + $0x268] sm:$0xff]
  %v161 = vld [vmem:[%s1 + $0x270] sm:$0xff]
  %v162 = vld [vmem:[%s1 + $0x278] sm:$0xff]
  %v163 = vld [vmem:[%s1 + $0x280] sm:$0xff]
  %v164 = vld [vmem:[%s1 + $0x288] sm:$0xff]
  %v165 = vld [vmem:[%s1 + $0x290] sm:$0xff]
  %v166 = vld [vmem:[%s1 + $0x298] sm:$0xff]
  %v167 = vld [vmem:[%s1 + $0x2a0] sm:$0xff]
  %v168 = vld [vmem:[%s1 + $0x2a8] sm:$0xff]
  %v169 = vld [vmem:[%s1 + $0x2b0] sm:$0xff]
  %v170 = vld [vmem:[%s1 + $0x2b8] sm:$0xff]
  %v171 = vld [vmem:[%s1 + $0x2c0] sm:$0xff]
  %v172 = vld [vmem:[%s1 + $0x2c8] sm:$0xff]
  %v173 = vld [vmem:[%s1 + $0x2d0] sm:$0xff]
  %v174 = vld [vmem:[%s1 + $0x2d8] sm:$0xff]
  %v175 = vld [vmem:[%s1 + $0x2e0] sm:$0xff]
  %v176 = vld [vmem:[%s1 + $0x2e8] sm:$0xff]
  %v177 = vld [vmem:[%s1 + $0x2f0] sm:$0xff]
  %v178 = vld [vmem:[%s1 + $0x2f8] sm:$0xff]
  %v179 = vld [vmem:[%s2] sm:$0x3]
  %v181 = vperm.slane %v179, 0
  %v182 = vperm.slane %v179, 1
  %v281 = vunpack.c.l.b16 %v83
  %v282 = vunpack.c.h.b16 %v83
  %v283 = vunpack.c.l.b16 %v84
  %v284 = vunpack.c.h.b16 %v84
  %v285 = vunpack.c.l.b16 %v85
  %v286 = vunpack.c.h.b16 %v85
  %v287 = vunpack.c.l.b16 %v86
  %v288 = vunpack.c.h.b16 %v86
  %v289 = vunpack.c.l.b16 %v87
  %v290 = vunpack.c.h.b16 %v87
  %v291 = vunpack.c.l.b16 %v88
  %v292 = vunpack.c.h.b16 %v88
  %v293 = vunpack.c.l.b16 %v89
  %v294 = vunpack.c.h.b16 %v89
  %v295 = vunpack.c.l.b16 %v90
  %v296 = vunpack.c.h.b16 %v90
  %v297 = vunpack.c.l.b16 %v91
  %v298 = vunpack.c.h.b16 %v91
  %v299 = vunpack.c.l.b16 %v92
  %v300 = vunpack.c.h.b16 %v92
  %v301 = vunpack.c.l.b16 %v93
  %v302 = vunpack.c.h.b16 %v93
  %v303 = vunpack.c.l.b16 %v94
  %v304 = vunpack.c.h.b16 %v94
  %v305 = vunpack.c.l.b16 %v95
  %v306 = vunpack.c.h.b16 %v95
  %v307 = vunpack.c.l.b16 %v96
  %v308 = vunpack.c.h.b16 %v96
  %v309 = vunpack.c.l.b16 %v97
  %v310 = vunpack.c.h.b16 %v97
  %v311 = vunpack.c.l.b16 %v98
  %v312 = vunpack.c.h.b16 %v98
  %v313 = vunpack.c.l.b16 %v99
  %v314 = vunpack.c.h.b16 %v99
  %v315 = vunpack.c.l.b16 %v100
  %v316 = vunpack.c.h.b16 %v100
  %v317 = vunpack.c.l.b16 %v101
  %v318 = vunpack.c.h.b16 %v101
  %v319 = vunpack.c.l.b16 %v102
  %v320 = vunpack.c.h.b16 %v102
  %v321 = vunpack.c.l.b16 %v103
  %v322 = vunpack.c.h.b16 %v103
  %v323 = vunpack.c.l.b16 %v104
  %v324 = vunpack.c.h.b16 %v104
  %v325 = vunpack.c.l.b16 %v105
  %v326 = vunpack.c.h.b16 %v105
  %v327 = vunpack.c.l.b16 %v106
  %v328 = vunpack.c.h.b16 %v106
  %v329 = vunpack.c.l.b16 %v107
  %v330 = vunpack.c.h.b16 %v107
  %v331 = vunpack.c.l.b16 %v108
  %v332 = vunpack.c.h.b16 %v108
  %v333 = vunpack.c.l.b16 %v109
  %v334 = vunpack.c.h.b16 %v109
  %v335 = vunpack.c.l.b16 %v110
  %v336 = vunpack.c.h.b16 %v110
  %v337 = vunpack.c.l.b16 %v111
  %v338 = vunpack.c.h.b16 %v111
  %v339 = vunpack.c.l.b16 %v112
  %v340 = vunpack.c.h.b16 %v112
  %v341 = vunpack.c.l.b16 %v113
  %v342 = vunpack.c.h.b16 %v113
  %v343 = vunpack.c.l.b16 %v114
  %v344 = vunpack.c.h.b16 %v114
  %v345 = vunpack.c.l.b16 %v115
  %v346 = vunpack.c.h.b16 %v115
  %v347 = vunpack.c.l.b16 %v116
  %v348 = vunpack.c.h.b16 %v116
  %v349 = vunpack.c.l.b16 %v117
  %v350 = vunpack.c.h.b16 %v117
  %v351 = vunpack.c.l.b16 %v118
  %v352 = vunpack.c.h.b16 %v118
  %v353 = vunpack.c.l.b16 %v119
  %v354 = vunpack.c.h.b16 %v119
  %v355 = vunpack.c.l.b16 %v120
  %v356 = vunpack.c.h.b16 %v120
  %v357 = vunpack.c.l.b16 %v121
  %v358 = vunpack.c.h.b16 %v121
  %v359 = vunpack.c.l.b16 %v122
  %v360 = vunpack.c.h.b16 %v122
  %v361 = vunpack.c.l.b16 %v123
  %v362 = vunpack.c.h.b16 %v123
  %v363 = vunpack.c.l.b16 %v124
  %v364 = vunpack.c.h.b16 %v124
  %v365 = vunpack.c.l.b16 %v125
  %v366 = vunpack.c.h.b16 %v125
  %v367 = vunpack.c.l.b16 %v126
  %v368 = vunpack.c.h.b16 %v126
  %v369 = vunpack.c.l.b16 %v127
  %v370 = vunpack.c.h.b16 %v127
  %v371 = vunpack.c.l.b16 %v128
  %v372 = vunpack.c.h.b16 %v128
  %v373 = vunpack.c.l.b16 %v129
  %v374 = vunpack.c.h.b16 %v129
  %v375 = vunpack.c.l.b16 %v130
  %v376 = vunpack.c.h.b16 %v130
  %v377 = vunpack.c.l.b16 %v131
  %v378 = vunpack.c.h.b16 %v131
  %v379 = vunpack.c.l.b16 %v132
  %v380 = vunpack.c.h.b16 %v132
  %v381 = vunpack.c.l.b16 %v133
  %v382 = vunpack.c.h.b16 %v133
  %v383 = vunpack.c.l.b16 %v134
  %v384 = vunpack.c.h.b16 %v134
  %v385 = vunpack.c.l.b16 %v135
  %v386 = vunpack.c.h.b16 %v135
  %v387 = vunpack.c.l.b16 %v136
  %v388 = vunpack.c.h.b16 %v136
  %v389 = vunpack.c.l.b16 %v137
  %v390 = vunpack.c.h.b16 %v137
  %v391 = vunpack.c.l.b16 %v138
  %v392 = vunpack.c.h.b16 %v138
  %v393 = vunpack.c.l.b16 %v139
  %v394 = vunpack.c.h.b16 %v139
  %v395 = vunpack.c.l.b16 %v140
  %v396 = vunpack.c.h.b16 %v140
  %v397 = vunpack.c.l.b16 %v141
  %v398 = vunpack.c.h.b16 %v141
  %v399 = vunpack.c.l.b16 %v142
  %v400 = vunpack.c.h.b16 %v142
  %v401 = vunpack.c.l.b16 %v143
  %v402 = vunpack.c.h.b16 %v143
  %v403 = vunpack.c.l.b16 %v144
  %v404 = vunpack.c.h.b16 %v144
  %v405 = vunpack.c.l.b16 %v145
  %v406 = vunpack.c.h.b16 %v145
  %v407 = vunpack.c.l.b16 %v146
  %v408 = vunpack.c.h.b16 %v146
  %v409 = vunpack.c.l.b16 %v147
  %v410 = vunpack.c.h.b16 %v147
  %v411 = vunpack.c.l.b16 %v148
  %v412 = vunpack.c.h.b16 %v148
  %v413 = vunpack.c.l.b16 %v149
  %v414 = vunpack.c.h.b16 %v149
  %v415 = vunpack.c.l.b16 %v150
  %v416 = vunpack.c.h.b16 %v150
  %v417 = vunpack.c.l.b16 %v151
  %v418 = vunpack.c.h.b16 %v151
  %v419 = vunpack.c.l.b16 %v152
  %v420 = vunpack.c.h.b16 %v152
  %v421 = vunpack.c.l.b16 %v153
  %v422 = vunpack.c.h.b16 %v153
  %v423 = vunpack.c.l.b16 %v154
  %v424 = vunpack.c.h.b16 %v154
  %v425 = vunpack.c.l.b16 %v155
  %v426 = vunpack.c.h.b16 %v155
  %v427 = vunpack.c.l.b16 %v156
  %v428 = vunpack.c.h.b16 %v156
  %v429 = vunpack.c.l.b16 %v157
  %v430 = vunpack.c.h.b16 %v157
  %v431 = vunpack.c.l.b16 %v158
  %v432 = vunpack.c.h.b16 %v158
  %v433 = vunpack.c.l.b16 %v159
  %v434 = vunpack.c.h.b16 %v159
  %v435 = vunpack.c.l.b16 %v160
  %v436 = vunpack.c.h.b16 %v160
  %v437 = vunpack.c.l.b16 %v161
  %v438 = vunpack.c.h.b16 %v161
  %v439 = vunpack.c.l.b16 %v162
  %v440 = vunpack.c.h.b16 %v162
  %v441 = vunpack.c.l.b16 %v163
  %v442 = vunpack.c.h.b16 %v163
  %v443 = vunpack.c.l.b16 %v164
  %v444 = vunpack.c.h.b16 %v164
  %v445 = vunpack.c.l.b16 %v165
  %v446 = vunpack.c.h.b16 %v165
  %v447 = vunpack.c.l.b16 %v166
  %v448 = vunpack.c.h.b16 %v166
  %v449 = vunpack.c.l.b16 %v167
  %v450 = vunpack.c.h.b16 %v167
  %v451 = vunpack.c.l.b16 %v168
  %v452 = vunpack.c.h.b16 %v168
  %v453 = vunpack.c.l.b16 %v169
  %v454 = vunpack.c.h.b16 %v169
  %v455 = vunpack.c.l.b16 %v170
  %v456 = vunpack.c.h.b16 %v170
  %v457 = vunpack.c.l.b16 %v171
  %v458 = vunpack.c.h.b16 %v171
  %v459 = vunpack.c.l.b16 %v172
  %v460 = vunpack.c.h.b16 %v172
  %v461 = vunpack.c.l.b16 %v173
  %v462 = vunpack.c.h.b16 %v173
  %v463 = vunpack.c.l.b16 %v174
  %v464 = vunpack.c.h.b16 %v174
  %v465 = vunpack.c.l.b16 %v175
  %v466 = vunpack.c.h.b16 %v175
  %v467 = vunpack.c.l.b16 %v176
  %v468 = vunpack.c.h.b16 %v176
  %v469 = vunpack.c.l.b16 %v177
  %v470 = vunpack.c.h.b16 %v177
  %v471 = vunpack.c.l.b16 %v178
  %v472 = vunpack.c.h.b16 %v178
  %v473 = vpack.c.b16 %v283, %v281
  %v474 = vpack.c.b16 %v284, %v282
  %v475 = vpack.c.b16 %v287, %v285
  %v476 = vpack.c.b16 %v288, %v286
  %v477 = vpack.c.b16 %v291, %v289
  %v478 = vpack.c.b16 %v292, %v290
  %v479 = vpack.c.b16 %v295, %v293
  %v480 = vpack.c.b16 %v296, %v294
  %v481 = vpack.c.b16 %v299, %v297
  %v482 = vpack.c.b16 %v300, %v298
  %v483 = vpack.c.b16 %v303, %v301
  %v484 = vpack.c.b16 %v304, %v302
  %v485 = vpack.c.b16 %v307, %v305
  %v486 = vpack.c.b16 %v308, %v306
  %v487 = vpack.c.b16 %v311, %v309
  %v488 = vpack.c.b16 %v312, %v310
  %v489 = vpack.c.b16 %v315, %v313
  %v490 = vpack.c.b16 %v316, %v314
  %v491 = vpack.c.b16 %v319, %v317
  %v492 = vpack.c.b16 %v320, %v318
  %v493 = vpack.c.b16 %v323, %v321
  %v494 = vpack.c.b16 %v324, %v322
  %v495 = vpack.c.b16 %v327, %v325
  %v496 = vpack.c.b16 %v328, %v326
  %v497 = vpack.c.b16 %v331, %v329
  %v498 = vpack.c.b16 %v332, %v330
  %v499 = vpack.c.b16 %v335, %v333
  %v500 = vpack.c.b16 %v336, %v334
  %v501 = vpack.c.b16 %v339, %v337
  %v502 = vpack.c.b16 %v340, %v338
  %v503 = vpack.c.b16 %v343, %v341
  %v504 = vpack.c.b16 %v344, %v342
  %v505 = vpack.c.b16 %v347, %v345
  %v506 = vpack.c.b16 %v348, %v346
  %v507 = vpack.c.b16 %v351, %v349
  %v508 = vpack.c.b16 %v352, %v350
  %v509 = vpack.c.b16 %v355, %v353
  %v510 = vpack.c.b16 %v356, %v354
  %v511 = vpack.c.b16 %v359, %v357
  %v512 = vpack.c.b16 %v360, %v358
  %v513 = vpack.c.b16 %v363, %v361
  %v514 = vpack.c.b16 %v364, %v362
  %v515 = vpack.c.b16 %v367, %v365
  %v516 = vpack.c.b16 %v368, %v366
  %v517 = vpack.c.b16 %v371, %v369
  %v518 = vpack.c.b16 %v372, %v370
  %v519 = vpack.c.b16 %v375, %v373
  %v520 = vpack.c.b16 %v376, %v374
  %v521 = vpack.c.b16 %v379, %v377
  %v522 = vpack.c.b16 %v380, %v378
  %v523 = vpack.c.b16 %v383, %v381
  %v524 = vpack.c.b16 %v384, %v382
  %v525 = vpack.c.b16 %v387, %v385
  %v526 = vpack.c.b16 %v388, %v386
  %v527 = vpack.c.b16 %v391, %v389
  %v528 = vpack.c.b16 %v392, %v390
  %v529 = vpack.c.b16 %v395, %v393
  %v530 = vpack.c.b16 %v396, %v394
  %v531 = vpack.c.b16 %v399, %v397
  %v532 = vpack.c.b16 %v400, %v398
  %v533 = vpack.c.b16 %v403, %v401
  %v534 = vpack.c.b16 %v404, %v402
  %v535 = vpack.c.b16 %v407, %v405
  %v536 = vpack.c.b16 %v408, %v406
  %v537 = vpack.c.b16 %v411, %v409
  %v538 = vpack.c.b16 %v412, %v410
  %v539 = vpack.c.b16 %v415, %v413
  %v540 = vpack.c.b16 %v416, %v414
  %v541 = vpack.c.b16 %v419, %v417
  %v542 = vpack.c.b16 %v420, %v418
  %v543 = vpack.c.b16 %v423, %v421
  %v544 = vpack.c.b16 %v424, %v422
  %v545 = vpack.c.b16 %v427, %v425
  %v546 = vpack.c.b16 %v428, %v426
  %v547 = vpack.c.b16 %v431, %v429
  %v548 = vpack.c.b16 %v432, %v430
  %v549 = vpack.c.b16 %v435, %v433
  %v550 = vpack.c.b16 %v436, %v434
  %v551 = vpack.c.b16 %v439, %v437
  %v552 = vpack.c.b16 %v440, %v438
  %v553 = vpack.c.b16 %v443, %v441
  %v554 = vpack.c.b16 %v444, %v442
  %v555 = vpack.c.b16 %v447, %v445
  %v556 = vpack.c.b16 %v448, %v446
  %v557 = vpack.c.b16 %v451, %v449
  %v558 = vpack.c.b16 %v452, %v450
  %v559 = vpack.c.b16 %v455, %v453
  %v560 = vpack.c.b16 %v456, %v454
  %v561 = vpack.c.b16 %v459, %v457
  %v562 = vpack.c.b16 %v460, %v458
  %v563 = vpack.c.b16 %v463, %v461
  %v564 = vpack.c.b16 %v464, %v462
  %v565 = vpack.c.b16 %v467, %v465
  %v566 = vpack.c.b16 %v468, %v466
  %v567 = vpack.c.b16 %v471, %v469
  %v568 = vpack.c.b16 %v472, %v470
  %665 = vmatpush.bf16.msra.mxu0 %v487
  %666 = vmatpush.bf16.msra.mxu0 %v485
  %667 = vmatpush.bf16.msra.mxu0 %v483
  %668 = vmatpush.bf16.msra.mxu0 %v481
  %669 = vmatpush.bf16.msra.mxu0 %v479
  %670 = vmatpush.bf16.msra.mxu0 %v477
  %671 = vmatpush.bf16.msra.mxu0 %v475
  %672 = vmatpush.bf16.msra.mxu0 %v473
  %673 = vmatmul.bf16.gmra.mxu0 %v77
  %v674 = vpop.f32.mrf.mxu0
  %v675 = vadd.f32 %v181, %v674
  %v676 = vpop.f32.mrf.mxu0
  %677 = vdwg.mxu0
  %678 = vmatpush.bf16.msra.mxu0 %v503
  %679 = vmatpush.bf16.msra.mxu0 %v501
  %680 = vmatpush.bf16.msra.mxu0 %v499
  %681 = vmatpush.bf16.msra.mxu0 %v497
  %682 = vmatpush.bf16.msra.mxu0 %v495
  %683 = vmatpush.bf16.msra.mxu0 %v493
  %684 = vmatpush.bf16.msra.mxu0 %v491
  %685 = vmatpush.bf16.msra.mxu0 %v489
  %686 = vmatmul.bf16.gmra.mxu0 %v78
  %v687 = vpop.f32.mrf.mxu0
  %v688 = vadd.f32 %v675, %v687
  %v689 = vpop.f32.mrf.mxu0
  %690 = vdwg.mxu0
  %691 = vmatpush.bf16.msra.mxu0 %v519
  %692 = vmatpush.bf16.msra.mxu0 %v517
  %693 = vmatpush.bf16.msra.mxu0 %v515
  %694 = vmatpush.bf16.msra.mxu0 %v513
  %695 = vmatpush.bf16.msra.mxu0 %v511
  %696 = vmatpush.bf16.msra.mxu0 %v509
  %697 = vmatpush.bf16.msra.mxu0 %v507
  %698 = vmatpush.bf16.msra.mxu0 %v505
  %699 = vmatmul.bf16.gmra.mxu0 %v79
  %v700 = vpop.f32.mrf.mxu0
  %v701 = vadd.f32 %v688, %v700
  %v702 = vpop.f32.mrf.mxu0
  %703 = vdwg.mxu0
  %704 = vmatpush.bf16.msra.mxu0 %v535
  %705 = vmatpush.bf16.msra.mxu0 %v533
  %706 = vmatpush.bf16.msra.mxu0 %v531
  %707 = vmatpush.bf16.msra.mxu0 %v529
  %708 = vmatpush.bf16.msra.mxu0 %v527
  %709 = vmatpush.bf16.msra.mxu0 %v525
  %710 = vmatpush.bf16.msra.mxu0 %v523
  %711 = vmatpush.bf16.msra.mxu0 %v521
  %712 = vmatmul.bf16.gmra.mxu0 %v80
  %v713 = vpop.f32.mrf.mxu0
  %v714 = vadd.f32 %v701, %v713
  %v715 = vpop.f32.mrf.mxu0
  %716 = vdwg.mxu0
  %717 = vmatpush.bf16.msra.mxu0 %v551
  %718 = vmatpush.bf16.msra.mxu0 %v549
  %719 = vmatpush.bf16.msra.mxu0 %v547
  %720 = vmatpush.bf16.msra.mxu0 %v545
  %721 = vmatpush.bf16.msra.mxu0 %v543
  %722 = vmatpush.bf16.msra.mxu0 %v541
  %723 = vmatpush.bf16.msra.mxu0 %v539
  %724 = vmatpush.bf16.msra.mxu0 %v537
  %725 = vmatmul.bf16.gmra.mxu0 %v81
  %v726 = vpop.f32.mrf.mxu0
  %v727 = vadd.f32 %v714, %v726
  %v728 = vpop.f32.mrf.mxu0
  %729 = vdwg.mxu0
  %730 = vmatpush.bf16.msra.mxu0 %v567
  %731 = vmatpush.bf16.msra.mxu0 %v565
  %732 = vmatpush.bf16.msra.mxu0 %v563
  %733 = vmatpush.bf16.msra.mxu0 %v561
  %734 = vmatpush.bf16.msra.mxu0 %v559
  %735 = vmatpush.bf16.msra.mxu0 %v557
  %736 = vmatpush.bf16.msra.mxu0 %v555
  %737 = vmatpush.bf16.msra.mxu0 %v553
  %738 = vmatmul.bf16.gmra.mxu0 %v82
  %v739 = vpop.f32.mrf.mxu0
  %v740 = vadd.f32 %v727, %v739
  %v741 = vpop.f32.mrf.mxu0
  %742 = vdwg.mxu0
  %743 = vmatpush.bf16.msra.mxu0 %v488
  %744 = vmatpush.bf16.msra.mxu0 %v486
  %745 = vmatpush.bf16.msra.mxu0 %v484
  %746 = vmatpush.bf16.msra.mxu0 %v482
  %747 = vmatpush.bf16.msra.mxu0 %v480
  %748 = vmatpush.bf16.msra.mxu0 %v478
  %749 = vmatpush.bf16.msra.mxu0 %v476
  %750 = vmatpush.bf16.msra.mxu0 %v474
  %751 = vmatmul.bf16.gmra.mxu0 %v77
  %v752 = vpop.f32.mrf.mxu0
  %v753 = vadd.f32 %v182, %v752
  %v754 = vpop.f32.mrf.mxu0
  %755 = vdwg.mxu0
  %756 = vmatpush.bf16.msra.mxu0 %v504
  %757 = vmatpush.bf16.msra.mxu0 %v502
  %758 = vmatpush.bf16.msra.mxu0 %v500
  %759 = vmatpush.bf16.msra.mxu0 %v498
  %760 = vmatpush.bf16.msra.mxu0 %v496
  %761 = vmatpush.bf16.msra.mxu0 %v494
  %762 = vmatpush.bf16.msra.mxu0 %v492
  %763 = vmatpush.bf16.msra.mxu0 %v490
  %764 = vmatmul.bf16.gmra.mxu0 %v78
  %v765 = vpop.f32.mrf.mxu0
  %v766 = vadd.f32 %v753, %v765
  %v767 = vpop.f32.mrf.mxu0
  %768 = vdwg.mxu0
  %769 = vmatpush.bf16.msra.mxu0 %v520
  %770 = vmatpush.bf16.msra.mxu0 %v518
  %771 = vmatpush.bf16.msra.mxu0 %v516
  %772 = vmatpush.bf16.msra.mxu0 %v514
  %773 = vmatpush.bf16.msra.mxu0 %v512
  %774 = vmatpush.bf16.msra.mxu0 %v510
  %775 = vmatpush.bf16.msra.mxu0 %v508
  %776 = vmatpush.bf16.msra.mxu0 %v506
  %777 = vmatmul.bf16.gmra.mxu0 %v79
  %v778 = vpop.f32.mrf.mxu0
  %v779 = vadd.f32 %v766, %v778
  %v780 = vpop.f32.mrf.mxu0
  %781 = vdwg.mxu0
  %782 = vmatpush.bf16.msra.mxu0 %v536
  %783 = vmatpush.bf16.msra.mxu0 %v534
  %784 = vmatpush.bf16.msra.mxu0 %v532
  %785 = vmatpush.bf16.msra.mxu0 %v530
  %786 = vmatpush.bf16.msra.mxu0 %v528
  %787 = vmatpush.bf16.msra.mxu0 %v526
  %788 = vmatpush.bf16.msra.mxu0 %v524
  %789 = vmatpush.bf16.msra.mxu0 %v522
  %790 = vmatmul.bf16.gmra.mxu0 %v80
  %v791 = vpop.f32.mrf.mxu0
  %v792 = vadd.f32 %v779, %v791
  %v793 = vpop.f32.mrf.mxu0
  %794 = vdwg.mxu0
  %795 = vmatpush.bf16.msra.mxu0 %v552
  %796 = vmatpush.bf16.msra.mxu0 %v550
  %797 = vmatpush.bf16.msra.mxu0 %v548
  %798 = vmatpush.bf16.msra.mxu0 %v546
  %799 = vmatpush.bf16.msra.mxu0 %v544
  %800 = vmatpush.bf16.msra.mxu0 %v542
  %801 = vmatpush.bf16.msra.mxu0 %v540
  %802 = vmatpush.bf16.msra.mxu0 %v538
  %803 = vmatmul.bf16.gmra.mxu0 %v81
  %v804 = vpop.f32.mrf.mxu0
  %v805 = vadd.f32 %v792, %v804
  %v806 = vpop.f32.mrf.mxu0
  %807 = vdwg.mxu0
  %808 = vmatpush.bf16.msra.mxu0 %v568
  %809 = vmatpush.bf16.msra.mxu0 %v566
  %810 = vmatpush.bf16.msra.mxu0 %v564
  %811 = vmatpush.bf16.msra.mxu0 %v562
  %812 = vmatpush.bf16.msra.mxu0 %v560
  %813 = vmatpush.bf16.msra.mxu0 %v558
  %814 = vmatpush.bf16.msra.mxu0 %v556
  %815 = vmatpush.bf16.msra.mxu0 %v554
  %816 = vmatmul.bf16.gmra.mxu0 %v82
  %v817 = vpop.f32.mrf.mxu0
  %v818 = vadd.f32 %v805, %v817
  %v819 = vpop.f32.mrf.mxu0
  %820 = vdwg.mxu0
  %v821 = vmax.f32 %v740, 0.0
  %v822 = vmax.f32 %v818, 0.0
  %v825 = vrot.slane %v821, 7
  %v826 = vrot.slane %v822, 7
  %829 = vst [vmem:[#allocation3] sm:$0xe] %v825
  %830 = vst [vmem:[#allocation3 + $0x8] sm:$0xe] %v826
  %831 = vst [vmem:[#allocation3 + $0x10] sm:$0xf] %v821
  %832 = vst [vmem:[#allocation3 + $0x18] sm:$0xf] %v822
  %v833 = vrot.slane %v821, 1
  %v834 = vrot.slane %v822, 1
  %837 = vst [vmem:[#allocation3 + $0x20] sm:$0x7] %v833
  %838 = vst [vmem:[#allocation3 + $0x28] sm:$0x7] %v834
  %839 = vst [vmem:[#allocation3] sm:$0xe0] %v825
  %840 = vst [vmem:[#allocation3 + $0x8] sm:$0xe0] %v826
  %841 = vst [vmem:[#allocation3 + $0x10] sm:$0xf0] %v821
  %842 = vst [vmem:[#allocation3 + $0x18] sm:$0xf0] %v822
  %843 = vst [vmem:[#allocation3 + $0x20] sm:$0x70] %v833
  %844 = vst [vmem:[#allocation3 + $0x28] sm:$0x70] %v834
  %v845 = vld [vmem:[#allocation3] sm:$0xff]
  %v846 = vld [vmem:[#allocation3 + $0x8] sm:$0xff]
  %v847 = vld [vmem:[#allocation3 + $0x10] sm:$0xff]
  %v848 = vld [vmem:[#allocation3 + $0x18] sm:$0xff]
  %v849 = vld [vmem:[#allocation3 + $0x20] sm:$0xff]
  %v850 = vld [vmem:[#allocation3 + $0x28] sm:$0xff]
  %v851 = vpack.c.bf16 %v845, %v845
  %v852 = vpack.c.bf16 %v846, %v846
  %v853 = vpack.c.bf16 %v847, %v847
  %v854 = vpack.c.bf16 %v848, %v848
  %v855 = vpack.c.bf16 %v849, %v849
  %v856 = vpack.c.bf16 %v850, %v850
  %v857 = vld [vmem:[%s3] sm:$0xf]
  %v858 = vld [vmem:[%s3 + $0x4] sm:$0xf]
  %v859 = vld [vmem:[%s3 + $0x8] sm:$0xf]
  %v860 = vld [vmem:[%s3 + $0xc] sm:$0xf]
  %v861 = vld [vmem:[%s3 + $0x10] sm:$0xf]
  %v862 = vld [vmem:[%s3 + $0x14] sm:$0xf]
  %v863 = vld [vmem:[%s3 + $0x18] sm:$0xf]
  %v864 = vld [vmem:[%s3 + $0x1c] sm:$0xf]
  %v865 = vld [vmem:[%s3 + $0x20] sm:$0xf]
  %v866 = vld [vmem:[%s3 + $0x24] sm:$0xf]
  %v867 = vld [vmem:[%s3 + $0x28] sm:$0xf]
  %v868 = vld [vmem:[%s3 + $0x2c] sm:$0xf]
  %v869 = vld [vmem:[%s3 + $0x30] sm:$0xf]
  %v870 = vld [vmem:[%s3 + $0x34] sm:$0xf]
  %v871 = vld [vmem:[%s3 + $0x38] sm:$0xf]
  %v872 = vld [vmem:[%s3 + $0x3c] sm:$0xf]
  %v873 = vld [vmem:[%s3 + $0x40] sm:$0xf]
  %v874 = vld [vmem:[%s3 + $0x44] sm:$0xf]
  %v875 = vld [vmem:[%s3 + $0x48] sm:$0xf]
  %v876 = vld [vmem:[%s3 + $0x4c] sm:$0xf]
  %v877 = vld [vmem:[%s3 + $0x50] sm:$0xf]
  %v878 = vld [vmem:[%s3 + $0x54] sm:$0xf]
  %v879 = vld [vmem:[%s3 + $0x58] sm:$0xf]
  %v880 = vld [vmem:[%s3 + $0x5c] sm:$0xf]
  %v881 = vld [vmem:[%s3 + $0x60] sm:$0xf]
  %v882 = vld [vmem:[%s3 + $0x64] sm:$0xf]
  %v883 = vld [vmem:[%s3 + $0x68] sm:$0xf]
  %v884 = vld [vmem:[%s3 + $0x6c] sm:$0xf]
  %v885 = vld [vmem:[%s3 + $0x70] sm:$0xf]
  %v886 = vld [vmem:[%s3 + $0x74] sm:$0xf]
  %v887 = vld [vmem:[%s3 + $0x78] sm:$0xf]
  %v888 = vld [vmem:[%s3 + $0x7c] sm:$0xf]
  %v889 = vld [vmem:[%s3 + $0x80] sm:$0xf]
  %v890 = vld [vmem:[%s3 + $0x84] sm:$0xf]
  %v891 = vld [vmem:[%s3 + $0x88] sm:$0xf]
  %v892 = vld [vmem:[%s3 + $0x8c] sm:$0xf]
  %v893 = vld [vmem:[%s3 + $0x90] sm:$0xf]
  %v894 = vld [vmem:[%s3 + $0x94] sm:$0xf]
  %v895 = vld [vmem:[%s3 + $0x98] sm:$0xf]
  %v896 = vld [vmem:[%s3 + $0x9c] sm:$0xf]
  %v897 = vld [vmem:[%s3 + $0xa0] sm:$0xf]
  %v898 = vld [vmem:[%s3 + $0xa4] sm:$0xf]
  %v899 = vld [vmem:[%s3 + $0xa8] sm:$0xf]
  %v900 = vld [vmem:[%s3 + $0xac] sm:$0xf]
  %v901 = vld [vmem:[%s3 + $0xb0] sm:$0xf]
  %v902 = vld [vmem:[%s3 + $0xb4] sm:$0xf]
  %v903 = vld [vmem:[%s3 + $0xb8] sm:$0xf]
  %v904 = vld [vmem:[%s3 + $0xbc] sm:$0xf]
  %v905 = vld [vmem:[%s3 + $0xc0] sm:$0xf]
  %v906 = vld [vmem:[%s3 + $0xc4] sm:$0xf]
  %v907 = vld [vmem:[%s3 + $0xc8] sm:$0xf]
  %v908 = vld [vmem:[%s3 + $0xcc] sm:$0xf]
  %v909 = vld [vmem:[%s3 + $0xd0] sm:$0xf]
  %v910 = vld [vmem:[%s3 + $0xd4] sm:$0xf]
  %v911 = vld [vmem:[%s3 + $0xd8] sm:$0xf]
  %v912 = vld [vmem:[%s3 + $0xdc] sm:$0xf]
  %v913 = vld [vmem:[%s3 + $0xe0] sm:$0xf]
  %v914 = vld [vmem:[%s3 + $0xe4] sm:$0xf]
  %v915 = vld [vmem:[%s3 + $0xe8] sm:$0xf]
  %v916 = vld [vmem:[%s3 + $0xec] sm:$0xf]
  %v917 = vld [vmem:[%s3 + $0xf0] sm:$0xf]
  %v918 = vld [vmem:[%s3 + $0xf4] sm:$0xf]
  %v919 = vld [vmem:[%s3 + $0xf8] sm:$0xf]
  %v920 = vld [vmem:[%s3 + $0xfc] sm:$0xf]
  %v921 = vld [vmem:[%s3 + $0x100] sm:$0xf]
  %v922 = vld [vmem:[%s3 + $0x104] sm:$0xf]
  %v923 = vld [vmem:[%s3 + $0x108] sm:$0xf]
  %v924 = vld [vmem:[%s3 + $0x10c] sm:$0xf]
  %v925 = vld [vmem:[%s3 + $0x110] sm:$0xf]
  %v926 = vld [vmem:[%s3 + $0x114] sm:$0xf]
  %v927 = vld [vmem:[%s3 + $0x118] sm:$0xf]
  %v928 = vld [vmem:[%s3 + $0x11c] sm:$0xf]
  %v929 = vld [vmem:[%s3 + $0x120] sm:$0xf]
  %v930 = vld [vmem:[%s3 + $0x124] sm:$0xf]
  %v931 = vld [vmem:[%s3 + $0x128] sm:$0xf]
  %v932 = vld [vmem:[%s3 + $0x12c] sm:$0xf]
  %v933 = vld [vmem:[%s3 + $0x130] sm:$0xf]
  %v934 = vld [vmem:[%s3 + $0x134] sm:$0xf]
  %v935 = vld [vmem:[%s3 + $0x138] sm:$0xf]
  %v936 = vld [vmem:[%s3 + $0x13c] sm:$0xf]
  %v937 = vld [vmem:[%s3 + $0x140] sm:$0xf]
  %v938 = vld [vmem:[%s3 + $0x144] sm:$0xf]
  %v939 = vld [vmem:[%s3 + $0x148] sm:$0xf]
  %v940 = vld [vmem:[%s3 + $0x14c] sm:$0xf]
  %v941 = vld [vmem:[%s3 + $0x150] sm:$0xf]
  %v942 = vld [vmem:[%s3 + $0x154] sm:$0xf]
  %v943 = vld [vmem:[%s3 + $0x158] sm:$0xf]
  %v944 = vld [vmem:[%s3 + $0x15c] sm:$0xf]
  %v945 = vld [vmem:[%s3 + $0x160] sm:$0xf]
  %v946 = vld [vmem:[%s3 + $0x164] sm:$0xf]
  %v947 = vld [vmem:[%s3 + $0x168] sm:$0xf]
  %v948 = vld [vmem:[%s3 + $0x16c] sm:$0xf]
  %v949 = vld [vmem:[%s3 + $0x170] sm:$0xf]
  %v950 = vld [vmem:[%s3 + $0x174] sm:$0xf]
  %v951 = vld [vmem:[%s3 + $0x178] sm:$0xf]
  %v952 = vld [vmem:[%s3 + $0x17c] sm:$0xf]
  %v953 = vld [vmem:[%s4] sm:$0x1]
  %v955 = vperm.slane %v953, 0
  %v1053 = vunpack.c.l.b16 %v857
  %v1054 = vunpack.c.l.b16 %v858
  %v1055 = vunpack.c.l.b16 %v859
  %v1056 = vunpack.c.l.b16 %v860
  %v1057 = vunpack.c.l.b16 %v861
  %v1058 = vunpack.c.l.b16 %v862
  %v1059 = vunpack.c.l.b16 %v863
  %v1060 = vunpack.c.l.b16 %v864
  %v1061 = vunpack.c.l.b16 %v865
  %v1062 = vunpack.c.l.b16 %v866
  %v1063 = vunpack.c.l.b16 %v867
  %v1064 = vunpack.c.l.b16 %v868
  %v1065 = vunpack.c.l.b16 %v869
  %v1066 = vunpack.c.l.b16 %v870
  %v1067 = vunpack.c.l.b16 %v871
  %v1068 = vunpack.c.l.b16 %v872
  %v1069 = vunpack.c.l.b16 %v873
  %v1070 = vunpack.c.l.b16 %v874
  %v1071 = vunpack.c.l.b16 %v875
  %v1072 = vunpack.c.l.b16 %v876
  %v1073 = vunpack.c.l.b16 %v877
  %v1074 = vunpack.c.l.b16 %v878
  %v1075 = vunpack.c.l.b16 %v879
  %v1076 = vunpack.c.l.b16 %v880
  %v1077 = vunpack.c.l.b16 %v881
  %v1078 = vunpack.c.l.b16 %v882
  %v1079 = vunpack.c.l.b16 %v883
  %v1080 = vunpack.c.l.b16 %v884
  %v1081 = vunpack.c.l.b16 %v885
  %v1082 = vunpack.c.l.b16 %v886
  %v1083 = vunpack.c.l.b16 %v887
  %v1084 = vunpack.c.l.b16 %v888
  %v1085 = vunpack.c.l.b16 %v889
  %v1086 = vunpack.c.l.b16 %v890
  %v1087 = vunpack.c.l.b16 %v891
  %v1088 = vunpack.c.l.b16 %v892
  %v1089 = vunpack.c.l.b16 %v893
  %v1090 = vunpack.c.l.b16 %v894
  %v1091 = vunpack.c.l.b16 %v895
  %v1092 = vunpack.c.l.b16 %v896
  %v1093 = vunpack.c.l.b16 %v897
  %v1094 = vunpack.c.l.b16 %v898
  %v1095 = vunpack.c.l.b16 %v899
  %v1096 = vunpack.c.l.b16 %v900
  %v1097 = vunpack.c.l.b16 %v901
  %v1098 = vunpack.c.l.b16 %v902
  %v1099 = vunpack.c.l.b16 %v903
  %v1100 = vunpack.c.l.b16 %v904
  %v1101 = vunpack.c.l.b16 %v905
  %v1102 = vunpack.c.l.b16 %v906
  %v1103 = vunpack.c.l.b16 %v907
  %v1104 = vunpack.c.l.b16 %v908
  %v1105 = vunpack.c.l.b16 %v909
  %v1106 = vunpack.c.l.b16 %v910
  %v1107 = vunpack.c.l.b16 %v911
  %v1108 = vunpack.c.l.b16 %v912
  %v1109 = vunpack.c.l.b16 %v913
  %v1110 = vunpack.c.l.b16 %v914
  %v1111 = vunpack.c.l.b16 %v915
  %v1112 = vunpack.c.l.b16 %v916
  %v1113 = vunpack.c.l.b16 %v917
  %v1114 = vunpack.c.l.b16 %v918
  %v1115 = vunpack.c.l.b16 %v919
  %v1116 = vunpack.c.l.b16 %v920
  %v1117 = vunpack.c.l.b16 %v921
  %v1118 = vunpack.c.l.b16 %v922
  %v1119 = vunpack.c.l.b16 %v923
  %v1120 = vunpack.c.l.b16 %v924
  %v1121 = vunpack.c.l.b16 %v925
  %v1122 = vunpack.c.l.b16 %v926
  %v1123 = vunpack.c.l.b16 %v927
  %v1124 = vunpack.c.l.b16 %v928
  %v1125 = vunpack.c.l.b16 %v929
  %v1126 = vunpack.c.l.b16 %v930
  %v1127 = vunpack.c.l.b16 %v931
  %v1128 = vunpack.c.l.b16 %v932
  %v1129 = vunpack.c.l.b16 %v933
  %v1130 = vunpack.c.l.b16 %v934
  %v1131 = vunpack.c.l.b16 %v935
  %v1132 = vunpack.c.l.b16 %v936
  %v1133 = vunpack.c.l.b16 %v937
  %v1134 = vunpack.c.l.b16 %v938
  %v1135 = vunpack.c.l.b16 %v939
  %v1136 = vunpack.c.l.b16 %v940
  %v1137 = vunpack.c.l.b16 %v941
  %v1138 = vunpack.c.l.b16 %v942
  %v1139 = vunpack.c.l.b16 %v943
  %v1140 = vunpack.c.l.b16 %v944
  %v1141 = vunpack.c.l.b16 %v945
  %v1142 = vunpack.c.l.b16 %v946
  %v1143 = vunpack.c.l.b16 %v947
  %v1144 = vunpack.c.l.b16 %v948
  %v1145 = vunpack.c.l.b16 %v949
  %v1146 = vunpack.c.l.b16 %v950
  %v1147 = vunpack.c.l.b16 %v951
  %v1148 = vunpack.c.l.b16 %v952
  %v1149 = vpack.c.b16 %v1054, %v1053
  %v1150 = vpack.c.b16 %v1056, %v1055
  %v1151 = vpack.c.b16 %v1058, %v1057
  %v1152 = vpack.c.b16 %v1060, %v1059
  %v1153 = vpack.c.b16 %v1062, %v1061
  %v1154 = vpack.c.b16 %v1064, %v1063
  %v1155 = vpack.c.b16 %v1066, %v1065
  %v1156 = vpack.c.b16 %v1068, %v1067
  %v1157 = vpack.c.b16 %v1070, %v1069
  %v1158 = vpack.c.b16 %v1072, %v1071
  %v1159 = vpack.c.b16 %v1074, %v1073
  %v1160 = vpack.c.b16 %v1076, %v1075
  %v1161 = vpack.c.b16 %v1078, %v1077
  %v1162 = vpack.c.b16 %v1080, %v1079
  %v1163 = vpack.c.b16 %v1082, %v1081
  %v1164 = vpack.c.b16 %v1084, %v1083
  %v1165 = vpack.c.b16 %v1086, %v1085
  %v1166 = vpack.c.b16 %v1088, %v1087
  %v1167 = vpack.c.b16 %v1090, %v1089
  %v1168 = vpack.c.b16 %v1092, %v1091
  %v1169 = vpack.c.b16 %v1094, %v1093
  %v1170 = vpack.c.b16 %v1096, %v1095
  %v1171 = vpack.c.b16 %v1098, %v1097
  %v1172 = vpack.c.b16 %v1100, %v1099
  %v1173 = vpack.c.b16 %v1102, %v1101
  %v1174 = vpack.c.b16 %v1104, %v1103
  %v1175 = vpack.c.b16 %v1106, %v1105
  %v1176 = vpack.c.b16 %v1108, %v1107
  %v1177 = vpack.c.b16 %v1110, %v1109
  %v1178 = vpack.c.b16 %v1112, %v1111
  %v1179 = vpack.c.b16 %v1114, %v1113
  %v1180 = vpack.c.b16 %v1116, %v1115
  %v1181 = vpack.c.b16 %v1118, %v1117
  %v1182 = vpack.c.b16 %v1120, %v1119
  %v1183 = vpack.c.b16 %v1122, %v1121
  %v1184 = vpack.c.b16 %v1124, %v1123
  %v1185 = vpack.c.b16 %v1126, %v1125
  %v1186 = vpack.c.b16 %v1128, %v1127
  %v1187 = vpack.c.b16 %v1130, %v1129
  %v1188 = vpack.c.b16 %v1132, %v1131
  %v1189 = vpack.c.b16 %v1134, %v1133
  %v1190 = vpack.c.b16 %v1136, %v1135
  %v1191 = vpack.c.b16 %v1138, %v1137
  %v1192 = vpack.c.b16 %v1140, %v1139
  %v1193 = vpack.c.b16 %v1142, %v1141
  %v1194 = vpack.c.b16 %v1144, %v1143
  %v1195 = vpack.c.b16 %v1146, %v1145
  %v1196 = vpack.c.b16 %v1148, %v1147
  %1245 = vmatpush.bf16.msra.mxu0 %v1156
  %1246 = vmatpush.bf16.msra.mxu0 %v1155
  %1247 = vmatpush.bf16.msra.mxu0 %v1154
  %1248 = vmatpush.bf16.msra.mxu0 %v1153
  %1249 = vmatpush.bf16.msra.mxu0 %v1152
  %1250 = vmatpush.bf16.msra.mxu0 %v1151
  %1251 = vmatpush.bf16.msra.mxu0 %v1150
  %1252 = vmatpush.bf16.msra.mxu0 %v1149
  %1253 = vmatmul.bf16.gmra.mxu0 %v851
  %v1254 = vpop.f32.mrf.mxu0
  %v1255 = vadd.f32 %v955, %v1254
  %v1256 = vpop.f32.mrf.mxu0
  %1257 = vdwg.mxu0
  %1258 = vmatpush.bf16.msra.mxu0 %v1164
  %1259 = vmatpush.bf16.msra.mxu0 %v1163
  %1260 = vmatpush.bf16.msra.mxu0 %v1162
  %1261 = vmatpush.bf16.msra.mxu0 %v1161
  %1262 = vmatpush.bf16.msra.mxu0 %v1160
  %1263 = vmatpush.bf16.msra.mxu0 %v1159
  %1264 = vmatpush.bf16.msra.mxu0 %v1158
  %1265 = vmatpush.bf16.msra.mxu0 %v1157
  %1266 = vmatmul.bf16.gmra.mxu0 %v852
  %v1267 = vpop.f32.mrf.mxu0
  %v1268 = vadd.f32 %v1255, %v1267
  %v1269 = vpop.f32.mrf.mxu0
  %1270 = vdwg.mxu0
  %1271 = vmatpush.bf16.msra.mxu0 %v1172
  %1272 = vmatpush.bf16.msra.mxu0 %v1171
  %1273 = vmatpush.bf16.msra.mxu0 %v1170
  %1274 = vmatpush.bf16.msra.mxu0 %v1169
  %1275 = vmatpush.bf16.msra.mxu0 %v1168
  %1276 = vmatpush.bf16.msra.mxu0 %v1167
  %1277 = vmatpush.bf16.msra.mxu0 %v1166
  %1278 = vmatpush.bf16.msra.mxu0 %v1165
  %1279 = vmatmul.bf16.gmra.mxu0 %v853
  %v1280 = vpop.f32.mrf.mxu0
  %v1281 = vadd.f32 %v1268, %v1280
  %v1282 = vpop.f32.mrf.mxu0
  %1283 = vdwg.mxu0
  %1284 = vmatpush.bf16.msra.mxu0 %v1180
  %1285 = vmatpush.bf16.msra.mxu0 %v1179
  %1286 = vmatpush.bf16.msra.mxu0 %v1178
  %1287 = vmatpush.bf16.msra.mxu0 %v1177
  %1288 = vmatpush.bf16.msra.mxu0 %v1176
  %1289 = vmatpush.bf16.msra.mxu0 %v1175
  %1290 = vmatpush.bf16.msra.mxu0 %v1174
  %1291 = vmatpush.bf16.msra.mxu0 %v1173
  %1292 = vmatmul.bf16.gmra.mxu0 %v854
  %v1293 = vpop.f32.mrf.mxu0
  %v1294 = vadd.f32 %v1281, %v1293
  %v1295 = vpop.f32.mrf.mxu0
  %1296 = vdwg.mxu0
  %1297 = vmatpush.bf16.msra.mxu0 %v1188
  %1298 = vmatpush.bf16.msra.mxu0 %v1187
  %1299 = vmatpush.bf16.msra.mxu0 %v1186
  %1300 = vmatpush.bf16.msra.mxu0 %v1185
  %1301 = vmatpush.bf16.msra.mxu0 %v1184
  %1302 = vmatpush.bf16.msra.mxu0 %v1183
  %1303 = vmatpush.bf16.msra.mxu0 %v1182
  %1304 = vmatpush.bf16.msra.mxu0 %v1181
  %1305 = vmatmul.bf16.gmra.mxu0 %v855
  %v1306 = vpop.f32.mrf.mxu0
  %v1307 = vadd.f32 %v1294, %v1306
  %v1308 = vpop.f32.mrf.mxu0
  %1309 = vdwg.mxu0
  %1310 = vmatpush.bf16.msra.mxu0 %v1196
  %1311 = vmatpush.bf16.msra.mxu0 %v1195
  %1312 = vmatpush.bf16.msra.mxu0 %v1194
  %1313 = vmatpush.bf16.msra.mxu0 %v1193
  %1314 = vmatpush.bf16.msra.mxu0 %v1192
  %1315 = vmatpush.bf16.msra.mxu0 %v1191
  %1316 = vmatpush.bf16.msra.mxu0 %v1190
  %1317 = vmatpush.bf16.msra.mxu0 %v1189
  %1318 = vmatmul.bf16.gmra.mxu0 %v856
  %v1319 = vpop.f32.mrf.mxu0
  %v1320 = vadd.f32 %v1307, %v1319
  %v1321 = vpop.f32.mrf.mxu0
  %1322 = vdwg.mxu0
  %v1323 = vmax.f32 %v1320, 0.0
  %v1325 = vrot.slane %v1323, 7
  %1327 = vst [vmem:[#allocation4] sm:$0xe] %v1325
  %1328 = vst [vmem:[#allocation4 + $0x8] sm:$0xf] %v1323
  %v1329 = vrot.slane %v1323, 1
  %1331 = vst [vmem:[#allocation4 + $0x10] sm:$0x7] %v1329
  %1332 = vst [vmem:[#allocation4] sm:$0xe0] %v1325
  %1333 = vst [vmem:[#allocation4 + $0x8] sm:$0xf0] %v1323
  %1334 = vst [vmem:[#allocation4 + $0x10] sm:$0x70] %v1329
  %v1335 = vld [vmem:[#allocation4] sm:$0xff]
  %v1336 = vld [vmem:[#allocation4 + $0x8] sm:$0xff]
  %v1337 = vld [vmem:[#allocation4 + $0x10] sm:$0xff]
  %v1338 = vpack.c.bf16 %v1335, %v1335
  %v1339 = vpack.c.bf16 %v1336, %v1336
  %v1340 = vpack.c.bf16 %v1337, %v1337
  %v1341 = vld [vmem:[%s5] sm:$0xf]
  %v1342 = vld [vmem:[%s5 + $0x4] sm:$0xf]
  %v1343 = vld [vmem:[%s5 + $0x8] sm:$0xf]
  %v1344 = vld [vmem:[%s5 + $0xc] sm:$0xf]
  %v1345 = vld [vmem:[%s5 + $0x10] sm:$0xf]
  %v1346 = vld [vmem:[%s5 + $0x14] sm:$0xf]
  %v1347 = vld [vmem:[%s5 + $0x18] sm:$0xf]
  %v1348 = vld [vmem:[%s5 + $0x1c] sm:$0xf]
  %v1349 = vld [vmem:[%s5 + $0x20] sm:$0xf]
  %v1350 = vld [vmem:[%s5 + $0x24] sm:$0xf]
  %v1351 = vld [vmem:[%s5 + $0x28] sm:$0xf]
  %v1352 = vld [vmem:[%s5 + $0x2c] sm:$0xf]
  %v1353 = vld [vmem:[%s5 + $0x30] sm:$0xf]
  %v1354 = vld [vmem:[%s5 + $0x34] sm:$0xf]
  %v1355 = vld [vmem:[%s5 + $0x38] sm:$0xf]
  %v1356 = vld [vmem:[%s5 + $0x3c] sm:$0xf]
  %v1357 = vld [vmem:[%s5 + $0x40] sm:$0xf]
  %v1358 = vld [vmem:[%s5 + $0x44] sm:$0xf]
  %v1359 = vld [vmem:[%s5 + $0x48] sm:$0xf]
  %v1360 = vld [vmem:[%s5 + $0x4c] sm:$0xf]
  %v1361 = vld [vmem:[%s5 + $0x50] sm:$0xf]
  %v1362 = vld [vmem:[%s5 + $0x54] sm:$0xf]
  %v1363 = vld [vmem:[%s5 + $0x58] sm:$0xf]
  %v1364 = vld [vmem:[%s5 + $0x5c] sm:$0xf]
  %v1365 = vld [vmem:[%s5 + $0x60] sm:$0xf]
  %v1366 = vld [vmem:[%s5 + $0x64] sm:$0xf]
  %v1367 = vld [vmem:[%s5 + $0x68] sm:$0xf]
  %v1368 = vld [vmem:[%s5 + $0x6c] sm:$0xf]
  %v1369 = vld [vmem:[%s5 + $0x70] sm:$0xf]
  %v1370 = vld [vmem:[%s5 + $0x74] sm:$0xf]
  %v1371 = vld [vmem:[%s5 + $0x78] sm:$0xf]
  %v1372 = vld [vmem:[%s5 + $0x7c] sm:$0xf]
  %v1373 = vld [vmem:[%s5 + $0x80] sm:$0xf]
  %v1374 = vld [vmem:[%s5 + $0x84] sm:$0xf]
  %v1375 = vld [vmem:[%s5 + $0x88] sm:$0xf]
  %v1376 = vld [vmem:[%s5 + $0x8c] sm:$0xf]
  %v1377 = vld [vmem:[%s5 + $0x90] sm:$0xf]
  %v1378 = vld [vmem:[%s5 + $0x94] sm:$0xf]
  %v1379 = vld [vmem:[%s5 + $0x98] sm:$0xf]
  %v1380 = vld [vmem:[%s5 + $0x9c] sm:$0xf]
  %v1381 = vld [vmem:[%s5 + $0xa0] sm:$0xf]
  %v1382 = vld [vmem:[%s5 + $0xa4] sm:$0xf]
  %v1383 = vld [vmem:[%s5 + $0xa8] sm:$0xf]
  %v1384 = vld [vmem:[%s5 + $0xac] sm:$0xf]
  %v1385 = vld [vmem:[%s5 + $0xb0] sm:$0xf]
  %v1386 = vld [vmem:[%s5 + $0xb4] sm:$0xf]
  %v1387 = vld [vmem:[%s5 + $0xb8] sm:$0xf]
  %v1388 = vld [vmem:[%s5 + $0xbc] sm:$0xf]
  %v1389 = vld [vmem:[%s6] sm:$0x1]
  %v1391 = vperm.slane %v1389, 0
  %v1441 = vunpack.c.l.b16 %v1341
  %v1442 = vunpack.c.l.b16 %v1342
  %v1443 = vunpack.c.l.b16 %v1343
  %v1444 = vunpack.c.l.b16 %v1344
  %v1445 = vunpack.c.l.b16 %v1345
  %v1446 = vunpack.c.l.b16 %v1346
  %v1447 = vunpack.c.l.b16 %v1347
  %v1448 = vunpack.c.l.b16 %v1348
  %v1449 = vunpack.c.l.b16 %v1349
  %v1450 = vunpack.c.l.b16 %v1350
  %v1451 = vunpack.c.l.b16 %v1351
  %v1452 = vunpack.c.l.b16 %v1352
  %v1453 = vunpack.c.l.b16 %v1353
  %v1454 = vunpack.c.l.b16 %v1354
  %v1455 = vunpack.c.l.b16 %v1355
  %v1456 = vunpack.c.l.b16 %v1356
  %v1457 = vunpack.c.l.b16 %v1357
  %v1458 = vunpack.c.l.b16 %v1358
  %v1459 = vunpack.c.l.b16 %v1359
  %v1460 = vunpack.c.l.b16 %v1360
  %v1461 = vunpack.c.l.b16 %v1361
  %v1462 = vunpack.c.l.b16 %v1362
  %v1463 = vunpack.c.l.b16 %v1363
  %v1464 = vunpack.c.l.b16 %v1364
  %v1465 = vunpack.c.l.b16 %v1365
  %v1466 = vunpack.c.l.b16 %v1366
  %v1467 = vunpack.c.l.b16 %v1367
  %v1468 = vunpack.c.l.b16 %v1368
  %v1469 = vunpack.c.l.b16 %v1369
  %v1470 = vunpack.c.l.b16 %v1370
  %v1471 = vunpack.c.l.b16 %v1371
  %v1472 = vunpack.c.l.b16 %v1372
  %v1473 = vunpack.c.l.b16 %v1373
  %v1474 = vunpack.c.l.b16 %v1374
  %v1475 = vunpack.c.l.b16 %v1375
  %v1476 = vunpack.c.l.b16 %v1376
  %v1477 = vunpack.c.l.b16 %v1377
  %v1478 = vunpack.c.l.b16 %v1378
  %v1479 = vunpack.c.l.b16 %v1379
  %v1480 = vunpack.c.l.b16 %v1380
  %v1481 = vunpack.c.l.b16 %v1381
  %v1482 = vunpack.c.l.b16 %v1382
  %v1483 = vunpack.c.l.b16 %v1383
  %v1484 = vunpack.c.l.b16 %v1384
  %v1485 = vunpack.c.l.b16 %v1385
  %v1486 = vunpack.c.l.b16 %v1386
  %v1487 = vunpack.c.l.b16 %v1387
  %v1488 = vunpack.c.l.b16 %v1388
  %v1489 = vpack.c.b16 %v1442, %v1441
  %v1490 = vpack.c.b16 %v1444, %v1443
  %v1491 = vpack.c.b16 %v1446, %v1445
  %v1492 = vpack.c.b16 %v1448, %v1447
  %v1493 = vpack.c.b16 %v1450, %v1449
  %v1494 = vpack.c.b16 %v1452, %v1451
  %v1495 = vpack.c.b16 %v1454, %v1453
  %v1496 = vpack.c.b16 %v1456, %v1455
  %v1497 = vpack.c.b16 %v1458, %v1457
  %v1498 = vpack.c.b16 %v1460, %v1459
  %v1499 = vpack.c.b16 %v1462, %v1461
  %v1500 = vpack.c.b16 %v1464, %v1463
  %v1501 = vpack.c.b16 %v1466, %v1465
  %v1502 = vpack.c.b16 %v1468, %v1467
  %v1503 = vpack.c.b16 %v1470, %v1469
  %v1504 = vpack.c.b16 %v1472, %v1471
  %v1505 = vpack.c.b16 %v1474, %v1473
  %v1506 = vpack.c.b16 %v1476, %v1475
  %v1507 = vpack.c.b16 %v1478, %v1477
  %v1508 = vpack.c.b16 %v1480, %v1479
  %v1509 = vpack.c.b16 %v1482, %v1481
  %v1510 = vpack.c.b16 %v1484, %v1483
  %v1511 = vpack.c.b16 %v1486, %v1485
  %v1512 = vpack.c.b16 %v1488, %v1487
  %1537 = vmatpush.bf16.msra.mxu0 %v1496
  %1538 = vmatpush.bf16.msra.mxu0 %v1495
  %1539 = vmatpush.bf16.msra.mxu0 %v1494
  %1540 = vmatpush.bf16.msra.mxu0 %v1493
  %1541 = vmatpush.bf16.msra.mxu0 %v1492
  %1542 = vmatpush.bf16.msra.mxu0 %v1491
  %1543 = vmatpush.bf16.msra.mxu0 %v1490
  %1544 = vmatpush.bf16.msra.mxu0 %v1489
  %1545 = vmatmul.bf16.gmra.mxu0 %v1338
  %v1546 = vpop.f32.mrf.mxu0
  %v1547 = vadd.f32 %v1391, %v1546
  %v1548 = vpop.f32.mrf.mxu0
  %1549 = vdwg.mxu0
  %1550 = vmatpush.bf16.msra.mxu0 %v1504
  %1551 = vmatpush.bf16.msra.mxu0 %v1503
  %1552 = vmatpush.bf16.msra.mxu0 %v1502
  %1553 = vmatpush.bf16.msra.mxu0 %v1501
  %1554 = vmatpush.bf16.msra.mxu0 %v1500
  %1555 = vmatpush.bf16.msra.mxu0 %v1499
  %1556 = vmatpush.bf16.msra.mxu0 %v1498
  %1557 = vmatpush.bf16.msra.mxu0 %v1497
  %1558 = vmatmul.bf16.gmra.mxu0 %v1339
  %v1559 = vpop.f32.mrf.mxu0
  %v1560 = vadd.f32 %v1547, %v1559
  %v1561 = vpop.f32.mrf.mxu0
  %1562 = vdwg.mxu0
  %1563 = vmatpush.bf16.msra.mxu0 %v1512
  %1564 = vmatpush.bf16.msra.mxu0 %v1511
  %1565 = vmatpush.bf16.msra.mxu0 %v1510
  %1566 = vmatpush.bf16.msra.mxu0 %v1509
  %1567 = vmatpush.bf16.msra.mxu0 %v1508
  %1568 = vmatpush.bf16.msra.mxu0 %v1507
  %1569 = vmatpush.bf16.msra.mxu0 %v1506
  %1570 = vmatpush.bf16.msra.mxu0 %v1505
  %1571 = vmatmul.bf16.gmra.mxu0 %v1340
  %v1572 = vpop.f32.mrf.mxu0
  %v1573 = vadd.f32 %v1560, %v1572
  %v1574 = vpop.f32.mrf.mxu0
  %1575 = vdwg.mxu0
  %v1576 = vmax.f32 %v1573, 0.0
  %v1578 = vrot.slane %v1576, 7
  %1580 = vst [vmem:[#allocation4] sm:$0xe] %v1578
  %1581 = vst [vmem:[#allocation4 + $0x8] sm:$0xf] %v1576
  %v1582 = vrot.slane %v1576, 1
  %1584 = vst [vmem:[#allocation4 + $0x10] sm:$0x7] %v1582
  %1585 = vst [vmem:[#allocation4] sm:$0xe0] %v1578
  %1586 = vst [vmem:[#allocation4 + $0x8] sm:$0xf0] %v1576
  %1587 = vst [vmem:[#allocation4 + $0x10] sm:$0x70] %v1582
  %v1588 = vld [vmem:[#allocation4] sm:$0xff]
  %v1589 = vld [vmem:[#allocation4 + $0x8] sm:$0xff]
  %v1590 = vld [vmem:[#allocation4 + $0x10] sm:$0xff]
  %v1591 = vpack.c.bf16 %v1588, %v1588
  %v1592 = vpack.c.bf16 %v1589, %v1589
  %v1593 = vpack.c.bf16 %v1590, %v1590
  %v1594 = vld [vmem:[%s7] sm:$0xf]
  %v1595 = vld [vmem:[%s7 + $0x4] sm:$0xf]
  %v1596 = vld [vmem:[%s7 + $0x8] sm:$0xf]
  %v1597 = vld [vmem:[%s7 + $0xc] sm:$0xf]
  %v1598 = vld [vmem:[%s7 + $0x10] sm:$0xf]
  %v1599 = vld [vmem:[%s7 + $0x14] sm:$0xf]
  %v1600 = vld [vmem:[%s7 + $0x18] sm:$0xf]
  %v1601 = vld [vmem:[%s7 + $0x1c] sm:$0xf]
  %v1602 = vld [vmem:[%s7 + $0x20] sm:$0xf]
  %v1603 = vld [vmem:[%s7 + $0x24] sm:$0xf]
  %v1604 = vld [vmem:[%s7 + $0x28] sm:$0xf]
  %v1605 = vld [vmem:[%s7 + $0x2c] sm:$0xf]
  %v1606 = vld [vmem:[%s7 + $0x30] sm:$0xf]
  %v1607 = vld [vmem:[%s7 + $0x34] sm:$0xf]
  %v1608 = vld [vmem:[%s7 + $0x38] sm:$0xf]
  %v1609 = vld [vmem:[%s7 + $0x3c] sm:$0xf]
  %v1610 = vld [vmem:[%s7 + $0x40] sm:$0xf]
  %v1611 = vld [vmem:[%s7 + $0x44] sm:$0xf]
  %v1612 = vld [vmem:[%s7 + $0x48] sm:$0xf]
  %v1613 = vld [vmem:[%s7 + $0x4c] sm:$0xf]
  %v1614 = vld [vmem:[%s7 + $0x50] sm:$0xf]
  %v1615 = vld [vmem:[%s7 + $0x54] sm:$0xf]
  %v1616 = vld [vmem:[%s7 + $0x58] sm:$0xf]
  %v1617 = vld [vmem:[%s7 + $0x5c] sm:$0xf]
  %v1618 = vld [vmem:[%s7 + $0x60] sm:$0xf]
  %v1619 = vld [vmem:[%s7 + $0x64] sm:$0xf]
  %v1620 = vld [vmem:[%s7 + $0x68] sm:$0xf]
  %v1621 = vld [vmem:[%s7 + $0x6c] sm:$0xf]
  %v1622 = vld [vmem:[%s7 + $0x70] sm:$0xf]
  %v1623 = vld [vmem:[%s7 + $0x74] sm:$0xf]
  %v1624 = vld [vmem:[%s7 + $0x78] sm:$0xf]
  %v1625 = vld [vmem:[%s7 + $0x7c] sm:$0xf]
  %v1626 = vld [vmem:[%s7 + $0x80] sm:$0xf]
  %v1627 = vld [vmem:[%s7 + $0x84] sm:$0xf]
  %v1628 = vld [vmem:[%s7 + $0x88] sm:$0xf]
  %v1629 = vld [vmem:[%s7 + $0x8c] sm:$0xf]
  %v1630 = vld [vmem:[%s7 + $0x90] sm:$0xf]
  %v1631 = vld [vmem:[%s7 + $0x94] sm:$0xf]
  %v1632 = vld [vmem:[%s7 + $0x98] sm:$0xf]
  %v1633 = vld [vmem:[%s7 + $0x9c] sm:$0xf]
  %v1634 = vld [vmem:[%s7 + $0xa0] sm:$0xf]
  %v1635 = vld [vmem:[%s7 + $0xa4] sm:$0xf]
  %v1636 = vld [vmem:[%s7 + $0xa8] sm:$0xf]
  %v1637 = vld [vmem:[%s7 + $0xac] sm:$0xf]
  %v1638 = vld [vmem:[%s7 + $0xb0] sm:$0xf]
  %v1639 = vld [vmem:[%s7 + $0xb4] sm:$0xf]
  %v1640 = vld [vmem:[%s7 + $0xb8] sm:$0xf]
  %v1641 = vld [vmem:[%s7 + $0xbc] sm:$0xf]
  %v1690 = vunpack.c.l.b16 %v1594
  %v1691 = vunpack.c.l.b16 %v1595
  %v1692 = vunpack.c.l.b16 %v1596
  %v1693 = vunpack.c.l.b16 %v1597
  %v1694 = vunpack.c.l.b16 %v1598
  %v1695 = vunpack.c.l.b16 %v1599
  %v1696 = vunpack.c.l.b16 %v1600
  %v1697 = vunpack.c.l.b16 %v1601
  %v1698 = vunpack.c.l.b16 %v1602
  %v1699 = vunpack.c.l.b16 %v1603
  %v1700 = vunpack.c.l.b16 %v1604
  %v1701 = vunpack.c.l.b16 %v1605
  %v1702 = vunpack.c.l.b16 %v1606
  %v1703 = vunpack.c.l.b16 %v1607
  %v1704 = vunpack.c.l.b16 %v1608
  %v1705 = vunpack.c.l.b16 %v1609
  %v1706 = vunpack.c.l.b16 %v1610
  %v1707 = vunpack.c.l.b16 %v1611
  %v1708 = vunpack.c.l.b16 %v1612
  %v1709 = vunpack.c.l.b16 %v1613
  %v1710 = vunpack.c.l.b16 %v1614
  %v1711 = vunpack.c.l.b16 %v1615
  %v1712 = vunpack.c.l.b16 %v1616
  %v1713 = vunpack.c.l.b16 %v1617
  %v1714 = vunpack.c.l.b16 %v1618
  %v1715 = vunpack.c.l.b16 %v1619
  %v1716 = vunpack.c.l.b16 %v1620
  %v1717 = vunpack.c.l.b16 %v1621
  %v1718 = vunpack.c.l.b16 %v1622
  %v1719 = vunpack.c.l.b16 %v1623
  %v1720 = vunpack.c.l.b16 %v1624
  %v1721 = vunpack.c.l.b16 %v1625
  %v1722 = vunpack.c.l.b16 %v1626
  %v1723 = vunpack.c.l.b16 %v1627
  %v1724 = vunpack.c.l.b16 %v1628
  %v1725 = vunpack.c.l.b16 %v1629
  %v1726 = vunpack.c.l.b16 %v1630
  %v1727 = vunpack.c.l.b16 %v1631
  %v1728 = vunpack.c.l.b16 %v1632
  %v1729 = vunpack.c.l.b16 %v1633
  %v1730 = vunpack.c.l.b16 %v1634
  %v1731 = vunpack.c.l.b16 %v1635
  %v1732 = vunpack.c.l.b16 %v1636
  %v1733 = vunpack.c.l.b16 %v1637
  %v1734 = vunpack.c.l.b16 %v1638
  %v1735 = vunpack.c.l.b16 %v1639
  %v1736 = vunpack.c.l.b16 %v1640
  %v1737 = vunpack.c.l.b16 %v1641
  %v1738 = vpack.c.b16 %v1691, %v1690
  %v1739 = vpack.c.b16 %v1693, %v1692
  %v1740 = vpack.c.b16 %v1695, %v1694
  %v1741 = vpack.c.b16 %v1697, %v1696
  %v1742 = vpack.c.b16 %v1699, %v1698
  %v1743 = vpack.c.b16 %v1701, %v1700
  %v1744 = vpack.c.b16 %v1703, %v1702
  %v1745 = vpack.c.b16 %v1705, %v1704
  %v1746 = vpack.c.b16 %v1707, %v1706
  %v1747 = vpack.c.b16 %v1709, %v1708
  %v1748 = vpack.c.b16 %v1711, %v1710
  %v1749 = vpack.c.b16 %v1713, %v1712
  %v1750 = vpack.c.b16 %v1715, %v1714
  %v1751 = vpack.c.b16 %v1717, %v1716
  %v1752 = vpack.c.b16 %v1719, %v1718
  %v1753 = vpack.c.b16 %v1721, %v1720
  %v1754 = vpack.c.b16 %v1723, %v1722
  %v1755 = vpack.c.b16 %v1725, %v1724
  %v1756 = vpack.c.b16 %v1727, %v1726
  %v1757 = vpack.c.b16 %v1729, %v1728
  %v1758 = vpack.c.b16 %v1731, %v1730
  %v1759 = vpack.c.b16 %v1733, %v1732
  %v1760 = vpack.c.b16 %v1735, %v1734
  %v1761 = vpack.c.b16 %v1737, %v1736
  %1786 = vmatpush.bf16.msra.mxu0 %v1745
  %1787 = vmatpush.bf16.msra.mxu0 %v1744
  %1788 = vmatpush.bf16.msra.mxu0 %v1743
  %1789 = vmatpush.bf16.msra.mxu0 %v1742
  %1790 = vmatpush.bf16.msra.mxu0 %v1741
  %1791 = vmatpush.bf16.msra.mxu0 %v1740
  %1792 = vmatpush.bf16.msra.mxu0 %v1739
  %1793 = vmatpush.bf16.msra.mxu0 %v1738
  %1794 = vmatmul.bf16.gmra.mxu0 %v1591
  %v1795 = vpop.f32.mrf.mxu0
  %v1796 = vadd.f32 0.0, %v1795
  %v1797 = vpop.f32.mrf.mxu0
  %1798 = vdwg.mxu0
  %1799 = vmatpush.bf16.msra.mxu0 %v1753
  %1800 = vmatpush.bf16.msra.mxu0 %v1752
  %1801 = vmatpush.bf16.msra.mxu0 %v1751
  %1802 = vmatpush.bf16.msra.mxu0 %v1750
  %1803 = vmatpush.bf16.msra.mxu0 %v1749
  %1804 = vmatpush.bf16.msra.mxu0 %v1748
  %1805 = vmatpush.bf16.msra.mxu0 %v1747
  %1806 = vmatpush.bf16.msra.mxu0 %v1746
  %1807 = vmatmul.bf16.gmra.mxu0 %v1592
  %v1808 = vpop.f32.mrf.mxu0
  %v1809 = vadd.f32 %v1796, %v1808
  %v1810 = vpop.f32.mrf.mxu0
  %1811 = vdwg.mxu0
  %1812 = vmatpush.bf16.msra.mxu0 %v1761
  %1813 = vmatpush.bf16.msra.mxu0 %v1760
  %1814 = vmatpush.bf16.msra.mxu0 %v1759
  %1815 = vmatpush.bf16.msra.mxu0 %v1758
  %1816 = vmatpush.bf16.msra.mxu0 %v1757
  %1817 = vmatpush.bf16.msra.mxu0 %v1756
  %1818 = vmatpush.bf16.msra.mxu0 %v1755
  %1819 = vmatpush.bf16.msra.mxu0 %v1754
  %1820 = vmatmul.bf16.gmra.mxu0 %v1593
  %v1821 = vpop.f32.mrf.mxu0
  %v1822 = vadd.f32 %v1809, %v1821
  %v1823 = vpop.f32.mrf.mxu0
  %1824 = vdwg.mxu0
  %v1825 = vmax.f32 %v1822, 0.0
  %v1826 = vld [vmem:[%s8] sm:$0xff]
  %v1827 = vld [vmem:[%s8 + $0x8] sm:$0xff]
  %v1828 = vld [vmem:[%s8 + $0x10] sm:$0xff]
  %v1829 = vld [vmem:[%s8 + $0x18] sm:$0xff]
  %vm1830 = vcmask 261120
  %v1832 = vsel %vm1830, %v1825, 0
  %1834 = vmatpush.msra.mxu0 0.0
  %1835 = vmatpush.msra.mxu0 0.0
  %1836 = vmatpush.msra.mxu0 0.0
  %1837 = vmatpush.msra.mxu0 0.0
  %1838 = vmatpush.msra.mxu0 0.0
  %1839 = vmatpush.msra.mxu0 0.0
  %1840 = vmatpush.msra.mxu0 0.0
  %1841 = vmatpush.msra.mxu0 0.0
  %1842 = vmatpush.msra.mxu0 0.0
  %1843 = vmatpush.msra.mxu0 0.0
  %1844 = vmatpush.msra.mxu0 0.0
  %1845 = vmatpush.msra.mxu0 0.0
  %1846 = vmatpush.msra.mxu0 %v1829
  %1847 = vmatpush.msra.mxu0 %v1828
  %1848 = vmatpush.msra.mxu0 %v1827
  %1849 = vmatpush.msra.mxu0 %v1826
  %1850 = vmatmul.f32.gmra.mxu0 %v1832
  %v1851 = vpop.f32.mrf.mxu0
  %v1852 = vadd.f32 0.0, %v1851
  %1853 = vdwg.mxu0
  %v1854 = vadd.f32 %v1573, %v1852
  %v1855 = vmax.f32 %v1854, 0.0
  %v1857 = vrot.slane %v1855, 7
  %1859 = vst [vmem:[#allocation4] sm:$0xe] %v1857
  %1860 = vst [vmem:[#allocation4 + $0x8] sm:$0xf] %v1855
  %v1861 = vrot.slane %v1855, 1
  %1863 = vst [vmem:[#allocation4 + $0x10] sm:$0x7] %v1861
  %1864 = vst [vmem:[#allocation4] sm:$0xe0] %v1857
  %1865 = vst [vmem:[#allocation4 + $0x8] sm:$0xf0] %v1855
  %1866 = vst [vmem:[#allocation4 + $0x10] sm:$0x70] %v1861
  %v1867 = vld [vmem:[#allocation4] sm:$0xff]
  %v1868 = vld [vmem:[#allocation4 + $0x8] sm:$0xff]
  %v1869 = vld [vmem:[#allocation4 + $0x10] sm:$0xff]
  %v1870 = vpack.c.bf16 %v1867, %v1867
  %v1871 = vpack.c.bf16 %v1868, %v1868
  %v1872 = vpack.c.bf16 %v1869, %v1869
  %s1873 = scalar_lea.vmem %s7, 192
  %v1874 = vld [vmem:[%s1873] sm:$0xf]
  %v1875 = vld [vmem:[%s1873 + $0x4] sm:$0xf]
  %v1876 = vld [vmem:[%s1873 + $0x8] sm:$0xf]
  %v1877 = vld [vmem:[%s1873 + $0xc] sm:$0xf]
  %v1878 = vld [vmem:[%s1873 + $0x10] sm:$0xf]
  %v1879 = vld [vmem:[%s1873 + $0x14] sm:$0xf]
  %v1880 = vld [vmem:[%s1873 + $0x18] sm:$0xf]
  %v1881 = vld [vmem:[%s1873 + $0x1c] sm:$0xf]
  %v1882 = vld [vmem:[%s1873 + $0x20] sm:$0xf]
  %v1883 = vld [vmem:[%s1873 + $0x24] sm:$0xf]
  %v1884 = vld [vmem:[%s1873 + $0x28] sm:$0xf]
  %v1885 = vld [vmem:[%s1873 + $0x2c] sm:$0xf]
  %v1886 = vld [vmem:[%s1873 + $0x30] sm:$0xf]
  %v1887 = vld [vmem:[%s1873 + $0x34] sm:$0xf]
  %v1888 = vld [vmem:[%s1873 + $0x38] sm:$0xf]
  %v1889 = vld [vmem:[%s1873 + $0x3c] sm:$0xf]
  %v1890 = vld [vmem:[%s1873 + $0x40] sm:$0xf]
  %v1891 = vld [vmem:[%s1873 + $0x44] sm:$0xf]
  %v1892 = vld [vmem:[%s1873 + $0x48] sm:$0xf]
  %v1893 = vld [vmem:[%s1873 + $0x4c] sm:$0xf]
  %v1894 = vld [vmem:[%s1873 + $0x50] sm:$0xf]
  %v1895 = vld [vmem:[%s1873 + $0x54] sm:$0xf]
  %v1896 = vld [vmem:[%s1873 + $0x58] sm:$0xf]
  %v1897 = vld [vmem:[%s1873 + $0x5c] sm:$0xf]
  %v1898 = vld [vmem:[%s1873 + $0x60] sm:$0xf]
  %v1899 = vld [vmem:[%s1873 + $0x64] sm:$0xf]
  %v1900 = vld [vmem:[%s1873 + $0x68] sm:$0xf]
  %v1901 = vld [vmem:[%s1873 + $0x6c] sm:$0xf]
  %v1902 = vld [vmem:[%s1873 + $0x70] sm:$0xf]
  %v1903 = vld [vmem:[%s1873 + $0x74] sm:$0xf]
  %v1904 = vld [vmem:[%s1873 + $0x78] sm:$0xf]
  %v1905 = vld [vmem:[%s1873 + $0x7c] sm:$0xf]
  %v1906 = vld [vmem:[%s1873 + $0x80] sm:$0xf]
  %v1907 = vld [vmem:[%s1873 + $0x84] sm:$0xf]
  %v1908 = vld [vmem:[%s1873 + $0x88] sm:$0xf]
  %v1909 = vld [vmem:[%s1873 + $0x8c] sm:$0xf]
  %v1910 = vld [vmem:[%s1873 + $0x90] sm:$0xf]
  %v1911 = vld [vmem:[%s1873 + $0x94] sm:$0xf]
  %v1912 = vld [vmem:[%s1873 + $0x98] sm:$0xf]
  %v1913 = vld [vmem:[%s1873 + $0x9c] sm:$0xf]
  %v1914 = vld [vmem:[%s1873 + $0xa0] sm:$0xf]
  %v1915 = vld [vmem:[%s1873 + $0xa4] sm:$0xf]
  %v1916 = vld [vmem:[%s1873 + $0xa8] sm:$0xf]
  %v1917 = vld [vmem:[%s1873 + $0xac] sm:$0xf]
  %v1918 = vld [vmem:[%s1873 + $0xb0] sm:$0xf]
  %v1919 = vld [vmem:[%s1873 + $0xb4] sm:$0xf]
  %v1920 = vld [vmem:[%s1873 + $0xb8] sm:$0xf]
  %v1921 = vld [vmem:[%s1873 + $0xbc] sm:$0xf]
  %v1970 = vunpack.c.l.b16 %v1874
  %v1971 = vunpack.c.l.b16 %v1875
  %v1972 = vunpack.c.l.b16 %v1876
  %v1973 = vunpack.c.l.b16 %v1877
  %v1974 = vunpack.c.l.b16 %v1878
  %v1975 = vunpack.c.l.b16 %v1879
  %v1976 = vunpack.c.l.b16 %v1880
  %v1977 = vunpack.c.l.b16 %v1881
  %v1978 = vunpack.c.l.b16 %v1882
  %v1979 = vunpack.c.l.b16 %v1883
  %v1980 = vunpack.c.l.b16 %v1884
  %v1981 = vunpack.c.l.b16 %v1885
  %v1982 = vunpack.c.l.b16 %v1886
  %v1983 = vunpack.c.l.b16 %v1887
  %v1984 = vunpack.c.l.b16 %v1888
  %v1985 = vunpack.c.l.b16 %v1889
  %v1986 = vunpack.c.l.b16 %v1890
  %v1987 = vunpack.c.l.b16 %v1891
  %v1988 = vunpack.c.l.b16 %v1892
  %v1989 = vunpack.c.l.b16 %v1893
  %v1990 = vunpack.c.l.b16 %v1894
  %v1991 = vunpack.c.l.b16 %v1895
  %v1992 = vunpack.c.l.b16 %v1896
  %v1993 = vunpack.c.l.b16 %v1897
  %v1994 = vunpack.c.l.b16 %v1898
  %v1995 = vunpack.c.l.b16 %v1899
  %v1996 = vunpack.c.l.b16 %v1900
  %v1997 = vunpack.c.l.b16 %v1901
  %v1998 = vunpack.c.l.b16 %v1902
  %v1999 = vunpack.c.l.b16 %v1903
  %v2000 = vunpack.c.l.b16 %v1904
  %v2001 = vunpack.c.l.b16 %v1905
  %v2002 = vunpack.c.l.b16 %v1906
  %v2003 = vunpack.c.l.b16 %v1907
  %v2004 = vunpack.c.l.b16 %v1908
  %v2005 = vunpack.c.l.b16 %v1909
  %v2006 = vunpack.c.l.b16 %v1910
  %v2007 = vunpack.c.l.b16 %v1911
  %v2008 = vunpack.c.l.b16 %v1912
  %v2009 = vunpack.c.l.b16 %v1913
  %v2010 = vunpack.c.l.b16 %v1914
  %v2011 = vunpack.c.l.b16 %v1915
  %v2012 = vunpack.c.l.b16 %v1916
  %v2013 = vunpack.c.l.b16 %v1917
  %v2014 = vunpack.c.l.b16 %v1918
  %v2015 = vunpack.c.l.b16 %v1919
  %v2016 = vunpack.c.l.b16 %v1920
  %v2017 = vunpack.c.l.b16 %v1921
  %v2018 = vpack.c.b16 %v1971, %v1970
  %v2019 = vpack.c.b16 %v1973, %v1972
  %v2020 = vpack.c.b16 %v1975, %v1974
  %v2021 = vpack.c.b16 %v1977, %v1976
  %v2022 = vpack.c.b16 %v1979, %v1978
  %v2023 = vpack.c.b16 %v1981, %v1980
  %v2024 = vpack.c.b16 %v1983, %v1982
  %v2025 = vpack.c.b16 %v1985, %v1984
  %v2026 = vpack.c.b16 %v1987, %v1986
  %v2027 = vpack.c.b16 %v1989, %v1988
  %v2028 = vpack.c.b16 %v1991, %v1990
  %v2029 = vpack.c.b16 %v1993, %v1992
  %v2030 = vpack.c.b16 %v1995, %v1994
  %v2031 = vpack.c.b16 %v1997, %v1996
  %v2032 = vpack.c.b16 %v1999, %v1998
  %v2033 = vpack.c.b16 %v2001, %v2000
  %v2034 = vpack.c.b16 %v2003, %v2002
  %v2035 = vpack.c.b16 %v2005, %v2004
  %v2036 = vpack.c.b16 %v2007, %v2006
  %v2037 = vpack.c.b16 %v2009, %v2008
  %v2038 = vpack.c.b16 %v2011, %v2010
  %v2039 = vpack.c.b16 %v2013, %v2012
  %v2040 = vpack.c.b16 %v2015, %v2014
  %v2041 = vpack.c.b16 %v2017, %v2016
  %2066 = vmatpush.bf16.msra.mxu0 %v2025
  %2067 = vmatpush.bf16.msra.mxu0 %v2024
  %2068 = vmatpush.bf16.msra.mxu0 %v2023
  %2069 = vmatpush.bf16.msra.mxu0 %v2022
  %2070 = vmatpush.bf16.msra.mxu0 %v2021
  %2071 = vmatpush.bf16.msra.mxu0 %v2020
  %2072 = vmatpush.bf16.msra.mxu0 %v2019
  %2073 = vmatpush.bf16.msra.mxu0 %v2018
  %2074 = vmatmul.bf16.gmra.mxu0 %v1870
  %v2075 = vpop.f32.mrf.mxu0
  %v2076 = vadd.f32 0.0, %v2075
  %v2077 = vpop.f32.mrf.mxu0
  %2078 = vdwg.mxu0
  %2079 = vmatpush.bf16.msra.mxu0 %v2033
  %2080 = vmatpush.bf16.msra.mxu0 %v2032
  %2081 = vmatpush.bf16.msra.mxu0 %v2031
  %2082 = vmatpush.bf16.msra.mxu0 %v2030
  %2083 = vmatpush.bf16.msra.mxu0 %v2029
  %2084 = vmatpush.bf16.msra.mxu0 %v2028
  %2085 = vmatpush.bf16.msra.mxu0 %v2027
  %2086 = vmatpush.bf16.msra.mxu0 %v2026
  %2087 = vmatmul.bf16.gmra.mxu0 %v1871
  %v2088 = vpop.f32.mrf.mxu0
  %v2089 = vadd.f32 %v2076, %v2088
  %v2090 = vpop.f32.mrf.mxu0
  %2091 = vdwg.mxu0
  %2092 = vmatpush.bf16.msra.mxu0 %v2041
  %2093 = vmatpush.bf16.msra.mxu0 %v2040
  %2094 = vmatpush.bf16.msra.mxu0 %v2039
  %2095 = vmatpush.bf16.msra.mxu0 %v2038
  %2096 = vmatpush.bf16.msra.mxu0 %v2037
  %2097 = vmatpush.bf16.msra.mxu0 %v2036
  %2098 = vmatpush.bf16.msra.mxu0 %v2035
  %2099 = vmatpush.bf16.msra.mxu0 %v2034
  %2100 = vmatmul.bf16.gmra.mxu0 %v1872
  %v2101 = vpop.f32.mrf.mxu0
  %v2102 = vadd.f32 %v2089, %v2101
  %v2103 = vpop.f32.mrf.mxu0
  %2104 = vdwg.mxu0
  %v2105 = vmax.f32 %v2102, 0.0
  %s2106 = scalar_lea.vmem %s8, 32
  %v2107 = vld [vmem:[%s2106] sm:$0xff]
  %v2108 = vld [vmem:[%s2106 + $0x8] sm:$0xff]
  %v2109 = vld [vmem:[%s2106 + $0x10] sm:$0xff]
  %v2110 = vld [vmem:[%s2106 + $0x18] sm:$0xff]
  %v2112 = vsel %vm1830, %v2105, 0
  %2114 = vmatpush.msra.mxu0 0.0
  %2115 = vmatpush.msra.mxu0 0.0
  %2116 = vmatpush.msra.mxu0 0.0
  %2117 = vmatpush.msra.mxu0 0.0
  %2118 = vmatpush.msra.mxu0 0.0
  %2119 = vmatpush.msra.mxu0 0.0
  %2120 = vmatpush.msra.mxu0 0.0
  %2121 = vmatpush.msra.mxu0 0.0
  %2122 = vmatpush.msra.mxu0 0.0
  %2123 = vmatpush.msra.mxu0 0.0
  %2124 = vmatpush.msra.mxu0 0.0
  %2125 = vmatpush.msra.mxu0 0.0
  %2126 = vmatpush.msra.mxu0 %v2110
  %2127 = vmatpush.msra.mxu0 %v2109
  %2128 = vmatpush.msra.mxu0 %v2108
  %2129 = vmatpush.msra.mxu0 %v2107
  %2130 = vmatmul.f32.gmra.mxu0 %v2112
  %v2131 = vpop.f32.mrf.mxu0
  %v2132 = vadd.f32 0.0, %v2131
  %2133 = vdwg.mxu0
  %v2134 = vadd.f32 %v1854, %v2132
  %v2135 = vmax.f32 %v2134, 0.0
  %2136 = vst [vmem:[%s9] sm:$0xff] %v2135
  // Predicated region
  $region38: #{encoder1_forward.1} parent=0 // pred_check
    _
  $region39: #{encoder1_forward.1} parent=0 // pred_check_branch
    %2138 = sbr.rel (0) target = $region41
  $region40: #{encoder1_forward.1} parent=0 // pred_region
    _
  $region41: #{encoder1_forward.1} parent=0 // pred_fallthru
    _
  // Predicated region
  $region42: #{encoder1_forward.1} parent=0 // pred_check
    _
  $region43: #{encoder1_forward.1} parent=0 // pred_check_branch
    %2140 = sbr.rel (0) target = $region45
  $region44: #{encoder1_forward.1} parent=0 // pred_region
    _
  $region45: #{encoder1_forward.1} parent=0 // pred_fallthru
    _

</llo_original>
